<compile_context>
chip_gen: v5e
topology: v5e:2x2
jax: 0.10.0
libtpu: 0.0.40
codegen_flags: <defaults>
</compile_context>

<pallas_src>
import math

import jax
import jax.numpy as jnp
from jax.experimental import pallas as pl
from jax.experimental.pallas import tpu as pltpu

# ---------------------------------------------------------------------------
# Config (small synthetic shapes)
# ---------------------------------------------------------------------------
B = 2          # batch
S = 8          # decoder sequence length
S_ENC = 8      # encoder (memory) sequence length
E = 32         # embed_dim
N_HEADS = 4
HEAD_DIM = E // N_HEADS
EXPANSION = 4
F_DIM = EXPANSION * E
LN_EPS = 1e-5


# ---------------------------------------------------------------------------
# Kernel
# ---------------------------------------------------------------------------
def decoder_block_kernel(
    q_ref, enc_ref, smask_ref, cmask_ref,
    sa_wqkv_ref,       # (E+1, 3E)  last row = bias; LN1 + 1/sqrt(d) folded into Q cols
    sa_wo_ref,         # (E+1, E)
    ca_wq_ref,         # (E+1, E)   LN2 + 1/sqrt(d) folded
    ca_wkv_ref,        # (E+1, 2E)
    ca_wo_ref,         # (E+1, E)
    ff_w1_ref,         # (E+1, F)   LN3 folded
    ff_w2_ref,         # (F+1, E)
    out_ref,
):
    bb, s, e = q_ref.shape
    s_enc = enc_ref.shape[1]
    head_dim = e // N_HEADS

    x2 = q_ref[...].reshape(bb * s, e)          # (R, E)
    enc2 = enc_ref[...].reshape(bb * s_enc, e)  # (R_enc, E)

    # Additive mask biases, hoisted out of the head loops.
    sbias = jnp.where(smask_ref[...] > 0, 0.0, -1e9)   # (bb, s, s)
    cbias = jnp.where(cmask_ref[...] > 0, 0.0, -1e9)   # (bb, s, s_enc)

    def linear(x, wb_ref, in_dim):
        w = wb_ref[:in_dim, :]
        b = wb_ref[in_dim:in_dim + 1, :]
        return jnp.dot(x, w, preferred_element_type=jnp.float32) + b

    def layernorm(x):
        # Affine (gamma/beta) is folded into the consumer weights at pack time.
        mu = jnp.mean(x, axis=-1, keepdims=True)
        var = jnp.mean(jnp.square(x - mu), axis=-1, keepdims=True)
        return (x - mu) * jax.lax.rsqrt(var + LN_EPS)

    def attention(q2, k2, v2, bias, s_q, s_k, wo_ref):
        # q2: (bb*s_q, E) already scaled by 1/sqrt(d); k2/v2: (bb*s_k, E).
        # Per-head output projection is accumulated directly (no lane concat);
        # wo_ref[lo:hi, :] is a sublane-tile-aligned (head_dim = 8 rows) slice.
        q3 = q2.reshape(bb, s_q, e)
        k3 = k2.reshape(bb, s_k, e)
        v3 = v2.reshape(bb, s_k, e)
        acc = None
        for h in range(N_HEADS):
            lo = h * head_dim
            hi = lo + head_dim
            sc = jnp.einsum('bqd,bkd->bqk', q3[:, :, lo:hi], k3[:, :, lo:hi],
                            preferred_element_type=jnp.float32) + bias
            sc = sc - jnp.max(sc, axis=-1, keepdims=True)
            p = jnp.exp(sc)
            p = p * pl.reciprocal(jnp.sum(p, axis=-1, keepdims=True), approx=True)
            head_out = jnp.einsum('bqk,bkd->bqd', p, v3[:, :, lo:hi],
                                  preferred_element_type=jnp.float32)
            proj = jnp.dot(head_out.reshape(bb * s_q, head_dim),
                           wo_ref[lo:hi, :],
                           preferred_element_type=jnp.float32)
            acc = proj if acc is None else acc + proj
        return acc + wo_ref[e:e + 1, :]          # add W_o bias once

    # ----- self-attention sub-block -----
    res = x2
    y = layernorm(x2)
    qkv = linear(y, sa_wqkv_ref, e)              # (R, 3E) — one fused projection
    q2 = qkv[:, :e]                              # scale already folded in
    k2 = qkv[:, e:2 * e]
    v2 = qkv[:, 2 * e:]
    y = attention(q2, k2, v2, sbias, s, s, sa_wo_ref)
    # dropout_1: identity (eval mode)
    y = y + res

    # ----- encoder-decoder attention sub-block -----
    res = y
    z = layernorm(y)
    q2 = linear(z, ca_wq_ref, e)                 # scale already folded in
    kv = linear(enc2, ca_wkv_ref, e)             # (R_enc, 2E) — fused K/V projection
    k2 = kv[:, :e]
    v2 = kv[:, e:]
    z = attention(q2, k2, v2, cbias, s, s_enc, ca_wo_ref)
    # dropout_2: identity (eval mode)
    y = z + res

    # ----- feed-forward sub-block -----
    res = y
    w = layernorm(y)
    f_dim = ff_w1_ref.shape[1]
    h = jnp.maximum(linear(w, ff_w1_ref, e), 0.0)
    w = linear(h, ff_w2_ref, f_dim)
    # dropout_3: identity (eval mode)
    out_ref[...] = (w + res).reshape(bb, s, e)


# ---------------------------------------------------------------------------
# Parameter packing (26 tensors -> 7 kernel inputs)
#   * biases packed as an extra weight row
#   * LayerNorm affine folded into the consumer weight:  W' = diag(g)W,
#     b' = b + beta @ W
#   * 1/sqrt(head_dim) folded into the Q projection columns
# ---------------------------------------------------------------------------
def pack_params(p):
    scale = 1.0 / math.sqrt(HEAD_DIM)

    def fold_ln(w, b, g, beta):
        # (ln(x)*g + beta) @ w + b  ==  ln(x) @ (g.T * w) + (beta @ w + b)
        return w * g.reshape(-1, 1), b + beta @ w

    def wb(w, b):
        return jnp.concatenate([w, b.reshape(1, -1)], axis=0)

    # self-attention fused QKV (LN1 folded, Q columns pre-scaled)
    w_qkv = jnp.concatenate([p["sa_wq"], p["sa_wk"], p["sa_wv"]], axis=1)
    b_qkv = jnp.concatenate([p["sa_bq"], p["sa_bk"], p["sa_bv"]], axis=1)
    w_qkv, b_qkv = fold_ln(w_qkv, b_qkv, p["ln1_g"], p["ln1_b"])
    w_qkv = w_qkv.at[:, :E].multiply(scale)
    b_qkv = b_qkv.at[:, :E].multiply(scale)
    sa_wqkv = wb(w_qkv, b_qkv)

    sa_wo = wb(p["sa_wo"], p["sa_bo"])

    # cross-attention Q (LN2 folded, pre-scaled); fused K/V from encoder output
    w_cq, b_cq = fold_ln(p["ca_wq"], p["ca_bq"], p["ln2_g"], p["ln2_b"])
    ca_wq = wb(w_cq * scale, b_cq * scale)
    ca_wkv = wb(jnp.concatenate([p["ca_wk"], p["ca_wv"]], axis=1),
                jnp.concatenate([p["ca_bk"], p["ca_bv"]], axis=1))
    ca_wo = wb(p["ca_wo"], p["ca_bo"])

    # feed-forward (LN3 folded into the first linear)
    w_f1, b_f1 = fold_ln(p["ff_w1"], p["ff_b1"], p["ln3_g"], p["ln3_b"])
    ff_w1 = wb(w_f1, b_f1)
    ff_w2 = wb(p["ff_w2"], p["ff_b2"])

    return [sa_wqkv, sa_wo, ca_wq, ca_wkv, ca_wo, ff_w1, ff_w2]


# ---------------------------------------------------------------------------
# Wrapper
# ---------------------------------------------------------------------------
def decoder_block(query, enc_out, self_mask, cross_mask, params, *,
                  batch_splits=1):
    """batch_splits: explicit opt-in batch split (e.g. 2 on v7x for LARGE
    shapes).  Default 1: at small/latency-bound sizes a single grid step avoids
    per-step overhead and duplicated resident-weight fetches."""
    b, s, e = query.shape
    s_enc = enc_out.shape[1]

    packed = pack_params(params)
    steps = batch_splits if (batch_splits > 1 and b % batch_splits == 0) else 1
    bb = b // steps

    data_specs = [
        pl.BlockSpec((bb, s, e), lambda i: (i, 0, 0)),
        pl.BlockSpec((bb, s_enc, e), lambda i: (i, 0, 0)),
        pl.BlockSpec((bb, s, s), lambda i: (i, 0, 0)),
        pl.BlockSpec((bb, s, s_enc), lambda i: (i, 0, 0)),
    ]
    # Constant index maps -> weights fetched once, stay resident across steps.
    # TODO(synk): at production sizes with steps > 1 add
    #   pipeline_mode=pl.Buffered(1) here to avoid double-buffering resident
    #   weights (VMEM headroom on v7x).
    weight_specs = [pl.BlockSpec(w.shape, lambda i: (0, 0)) for w in packed]

    return pl.pallas_call(
        decoder_block_kernel,
        out_shape=jax.ShapeDtypeStruct((b, s, e), jnp.float32),
        grid_spec=pltpu.PrefetchScalarGridSpec(
            num_scalar_prefetch=0,
            grid=(steps,),
            in_specs=data_specs + weight_specs,
            out_specs=pl.BlockSpec((bb, s, e), lambda i: (i, 0, 0)),
        ),
        compiler_params=pltpu.CompilerParams(
            dimension_semantics=("parallel",)),
    )(query, enc_out, self_mask, cross_mask, *packed)


# ---------------------------------------------------------------------------
# Pure-JAX reference (for a sanity check)
# ---------------------------------------------------------------------------
def _ref_layernorm(x, g, b):
    mu = jnp.mean(x, axis=-1, keepdims=True)
    var = jnp.mean((x - mu) ** 2, axis=-1, keepdims=True)
    return (x - mu) / jnp.sqrt(var + LN_EPS) * g + b


def _ref_mha(xq, xkv, mask, wq, bq, wk, bk, wv, bv, wo, bo):
    Bq, Sq, _ = xq.shape
    Sk = xkv.shape[1]
    q = xq @ wq + bq
    k = xkv @ wk + bk
    v = xkv @ wv + bv
    q = q.reshape(Bq, Sq, N_HEADS, HEAD_DIM).transpose(0, 2, 1, 3)
    k = k.reshape(Bq, Sk, N_HEADS, HEAD_DIM).transpose(0, 2, 1, 3)
    v = v.reshape(Bq, Sk, N_HEADS, HEAD_DIM).transpose(0, 2, 1, 3)
    scores = jnp.einsum("bhqd,bhkd->bhqk", q, k) / math.sqrt(HEAD_DIM)
    scores = jnp.where(mask[:, None, :, :] > 0, scores, -1e9)
    p = jax.nn.softmax(scores, axis=-1)
    o = jnp.einsum("bhqk,bhkd->bhqd", p, v)
    o = o.transpose(0, 2, 1, 3).reshape(Bq, Sq, E)
    return o @ wo + bo


def decoder_block_ref(query, enc_out, self_mask, cross_mask, p):
    x = query
    res = x
    y = _ref_layernorm(x, p["ln1_g"], p["ln1_b"])
    y = _ref_mha(y, y, self_mask, p["sa_wq"], p["sa_bq"], p["sa_wk"], p["sa_bk"],
                 p["sa_wv"], p["sa_bv"], p["sa_wo"], p["sa_bo"])
    y = y + res
    res = y
    z = _ref_layernorm(y, p["ln2_g"], p["ln2_b"])
    z = _ref_mha(z, enc_out, cross_mask, p["ca_wq"], p["ca_bq"], p["ca_wk"],
                 p["ca_bk"], p["ca_wv"], p["ca_bv"], p["ca_wo"], p["ca_bo"])
    y = z + res
    res = y
    w = _ref_layernorm(y, p["ln3_g"], p["ln3_b"])
    h = jnp.maximum(w @ p["ff_w1"] + p["ff_b1"], 0.0)
    w = h @ p["ff_w2"] + p["ff_b2"]
    return w + res


# ---------------------------------------------------------------------------
# Deterministic parameter / input construction
# ---------------------------------------------------------------------------
def make_params(key):
    keys = jax.random.split(key, 32)
    ki = iter(range(32))

    def lin(in_dim, out_dim):
        k_w = keys[next(ki)]
        k_b = keys[next(ki)]
        scale = 1.0 / math.sqrt(in_dim)
        w = jax.random.uniform(k_w, (in_dim, out_dim), jnp.float32, -scale, scale)
        b = jax.random.uniform(k_b, (1, out_dim), jnp.float32, -scale, scale)
        return w, b

    params = {}
    params["ln1_g"] = jnp.ones((1, E), jnp.float32)
    params["ln1_b"] = jnp.zeros((1, E), jnp.float32)
    params["ln2_g"] = jnp.ones((1, E), jnp.float32)
    params["ln2_b"] = jnp.zeros((1, E), jnp.float32)
    params["ln3_g"] = jnp.ones((1, E), jnp.float32)
    params["ln3_b"] = jnp.zeros((1, E), jnp.float32)

    for pre in ("sa", "ca"):
        for name in ("q", "k", "v", "o"):
            w, bb = lin(E, E)
            params[f"{pre}_w{name}"] = w
            params[f"{pre}_b{name}"] = bb

    params["ff_w1"], params["ff_b1"] = lin(E, F_DIM)
    params["ff_w2"], params["ff_b2"] = lin(F_DIM, E)
    return params


if __name__ == "__main__":
    root = jax.random.PRNGKey(0)
    k_p, k_q, k_e = jax.random.split(root, 3)

    params = make_params(k_p)
    query = jax.random.normal(k_q, (B, S, E), jnp.float32)
    enc_out = jax.random.normal(k_e, (B, S_ENC, E), jnp.float32)

    # causal mask for decoder self-attention, full mask for enc-dec attention
    causal = jnp.tril(jnp.ones((S, S), jnp.float32))
    self_mask = jnp.broadcast_to(causal, (B, S, S))
    cross_mask = jnp.ones((B, S, S_ENC), jnp.float32)

    out = decoder_block(query, enc_out, self_mask, cross_mask, params)
    out = jax.block_until_ready(out)

    ref = decoder_block_ref(query, enc_out, self_mask, cross_mask, params)
    assert out.shape == (B, S, E)
    # Tolerance accounts for the approximate (EUP) reciprocal in the softmax
    # and the host-side LN/scale weight folding.
    assert jnp.allclose(out, ref, rtol=2e-3, atol=2e-3), (
        f"max abs err {jnp.max(jnp.abs(out - ref))}"
    )

    print("KERNEL_OK")
</pallas_src>

<mosaic_0001>
module attributes {stable_mosaic.version = 11 : i64} {
  func.func @decoder_block_kernel(%arg0: i32, %arg1: memref<2x8x32xf32, #tpu.memory_space<vmem>>, %arg2: memref<2x8x32xf32, #tpu.memory_space<vmem>>, %arg3: memref<2x8x8xf32, #tpu.memory_space<vmem>>, %arg4: memref<2x8x8xf32, #tpu.memory_space<vmem>>, %arg5: memref<33x96xf32, #tpu.memory_space<vmem>>, %arg6: memref<33x32xf32, #tpu.memory_space<vmem>>, %arg7: memref<33x32xf32, #tpu.memory_space<vmem>>, %arg8: memref<33x64xf32, #tpu.memory_space<vmem>>, %arg9: memref<33x32xf32, #tpu.memory_space<vmem>>, %arg10: memref<33x128xf32, #tpu.memory_space<vmem>>, %arg11: memref<129x32xf32, #tpu.memory_space<vmem>>, %arg12: memref<2x8x32xf32, #tpu.memory_space<vmem>>) attributes {dimension_semantics = [#tpu.dimension_semantics<parallel>], iteration_bounds = array<i64: 1>, scalar_prefetch = 0 : i64, scratch_operands = 0 : i64, tpu.core_type = #tpu.core_type<tc>, window_params = [{transform_indices = @transform_0, window_bounds = array<i64: 2, 8, 32>}, {transform_indices = @transform_1, window_bounds = array<i64: 2, 8, 32>}, {transform_indices = @transform_2, window_bounds = array<i64: 2, 8, 8>}, {transform_indices = @transform_3, window_bounds = array<i64: 2, 8, 8>}, {pipeline_mode = #tpu.pipeline_mode<synchronous>, transform_indices = @transform_4, window_bounds = array<i64: 33, 96>}, {pipeline_mode = #tpu.pipeline_mode<synchronous>, transform_indices = @transform_5, window_bounds = array<i64: 33, 32>}, {pipeline_mode = #tpu.pipeline_mode<synchronous>, transform_indices = @transform_6, window_bounds = array<i64: 33, 32>}, {pipeline_mode = #tpu.pipeline_mode<synchronous>, transform_indices = @transform_7, window_bounds = array<i64: 33, 64>}, {pipeline_mode = #tpu.pipeline_mode<synchronous>, transform_indices = @transform_8, window_bounds = array<i64: 33, 32>}, {pipeline_mode = #tpu.pipeline_mode<synchronous>, transform_indices = @transform_9, window_bounds = array<i64: 33, 128>}, {pipeline_mode = #tpu.pipeline_mode<synchronous>, transform_indices = @transform_10, window_bounds = array<i64: 129, 32>}, {transform_indices = @transform_11, window_bounds = array<i64: 2, 8, 32>}]} {
    %c0 = arith.constant 0 : index
    %c0_0 = arith.constant 0 : index
    %c0_1 = arith.constant 0 : index
    %0 = vector.load %arg1[%c0, %c0_0, %c0_1] : memref<2x8x32xf32, #tpu.memory_space<vmem>>, vector<2x8x32xf32>
    %1 = vector.shape_cast %0 : vector<2x8x32xf32> to vector<16x32xf32>
    %c0_2 = arith.constant 0 : index
    %c0_3 = arith.constant 0 : index
    %c0_4 = arith.constant 0 : index
    %2 = vector.load %arg2[%c0_2, %c0_3, %c0_4] : memref<2x8x32xf32, #tpu.memory_space<vmem>>, vector<2x8x32xf32>
    %3 = vector.shape_cast %2 : vector<2x8x32xf32> to vector<16x32xf32>
    %c0_5 = arith.constant 0 : index
    %c0_6 = arith.constant 0 : index
    %c0_7 = arith.constant 0 : index
    %4 = vector.load %arg3[%c0_5, %c0_6, %c0_7] : memref<2x8x8xf32, #tpu.memory_space<vmem>>, vector<2x8x8xf32>
    %cst = arith.constant 0.000000e+00 : f32
    %5 = vector.broadcast %cst : f32 to vector<2x8x8xf32>
    %6 = arith.cmpf ogt, %4, %5 : vector<2x8x8xf32>
    %cst_8 = arith.constant 0.000000e+00 : f32
    %cst_9 = arith.constant -1.000000e+09 : f32
    %7 = vector.broadcast %cst_8 : f32 to vector<2x8x8xf32>
    %8 = vector.broadcast %cst_9 : f32 to vector<2x8x8xf32>
    %9 = arith.select %6, %7, %8 : vector<2x8x8xi1>, vector<2x8x8xf32>
    %c0_10 = arith.constant 0 : index
    %c0_11 = arith.constant 0 : index
    %c0_12 = arith.constant 0 : index
    %10 = vector.load %arg4[%c0_10, %c0_11, %c0_12] : memref<2x8x8xf32, #tpu.memory_space<vmem>>, vector<2x8x8xf32>
    %cst_13 = arith.constant 0.000000e+00 : f32
    %11 = vector.broadcast %cst_13 : f32 to vector<2x8x8xf32>
    %12 = arith.cmpf ogt, %10, %11 : vector<2x8x8xf32>
    %cst_14 = arith.constant 0.000000e+00 : f32
    %cst_15 = arith.constant -1.000000e+09 : f32
    %13 = vector.broadcast %cst_14 : f32 to vector<2x8x8xf32>
    %14 = vector.broadcast %cst_15 : f32 to vector<2x8x8xf32>
    %15 = arith.select %12, %13, %14 : vector<2x8x8xi1>, vector<2x8x8xf32>
    %cst_16 = arith.constant dense<0.000000e+00> : vector<16xf32>
    %16 = vector.multi_reduction <add>, %1, %cst_16 [1] : vector<16x32xf32> to vector<16xf32>
    %17 = vector.shape_cast %16 : vector<16xf32> to vector<16x1xf32>
    %cst_17 = arith.constant 3.200000e+01 : f32
    %18 = vector.broadcast %cst_17 : f32 to vector<16x1xf32>
    %19 = arith.divf %17, %18 : vector<16x1xf32>
    %20 = vector.broadcast %19 : vector<16x1xf32> to vector<16x32xf32>
    %21 = arith.subf %1, %20 : vector<16x32xf32>
    %22 = arith.mulf %21, %21 : vector<16x32xf32>
    %cst_18 = arith.constant dense<0.000000e+00> : vector<16xf32>
    %23 = vector.multi_reduction <add>, %22, %cst_18 [1] : vector<16x32xf32> to vector<16xf32>
    %24 = vector.shape_cast %23 : vector<16xf32> to vector<16x1xf32>
    %cst_19 = arith.constant 3.200000e+01 : f32
    %25 = vector.broadcast %cst_19 : f32 to vector<16x1xf32>
    %26 = arith.divf %24, %25 : vector<16x1xf32>
    %27 = vector.broadcast %19 : vector<16x1xf32> to vector<16x32xf32>
    %28 = arith.subf %1, %27 : vector<16x32xf32>
    %cst_20 = arith.constant 9.99999974E-6 : f32
    %29 = vector.broadcast %cst_20 : f32 to vector<16x1xf32>
    %30 = arith.addf %26, %29 : vector<16x1xf32>
    %31 = math.rsqrt %30 : vector<16x1xf32>
    %32 = vector.broadcast %31 : vector<16x1xf32> to vector<16x32xf32>
    %33 = arith.mulf %28, %32 : vector<16x32xf32>
    %c0_21 = arith.constant 0 : index
    %c0_22 = arith.constant 0 : index
    %34 = vector.load %arg5[%c0_21, %c0_22] : memref<33x96xf32, #tpu.memory_space<vmem>>, vector<32x96xf32>
    %c32 = arith.constant 32 : index
    %c0_23 = arith.constant 0 : index
    %35 = vector.load %arg5[%c32, %c0_23] : memref<33x96xf32, #tpu.memory_space<vmem>>, vector<1x96xf32>
    %cst_24 = arith.constant dense<0.000000e+00> : vector<16x96xf32>
    %36 = tpu.matmul %33, %34, %cst_24 {dimension_numbers = #tpu.dot_dimension_numbers<[1], [0], [0], [1], [0, 0, 1, 1], [], []>} : vector<16x32xf32>, vector<32x96xf32>, vector<16x96xf32> -> vector<16x96xf32>
    %37 = vector.broadcast %35 : vector<1x96xf32> to vector<16x96xf32>
    %38 = arith.addf %36, %37 : vector<16x96xf32>
    %39 = vector.extract_strided_slice %38 {offsets = [0, 0], sizes = [16, 32], strides = [1, 1]} : vector<16x96xf32> to vector<16x32xf32>
    %40 = vector.extract_strided_slice %38 {offsets = [0, 32], sizes = [16, 32], strides = [1, 1]} : vector<16x96xf32> to vector<16x32xf32>
    %41 = vector.extract_strided_slice %38 {offsets = [0, 64], sizes = [16, 32], strides = [1, 1]} : vector<16x96xf32> to vector<16x32xf32>
    %42 = vector.shape_cast %39 : vector<16x32xf32> to vector<2x8x32xf32>
    %43 = vector.shape_cast %40 : vector<16x32xf32> to vector<2x8x32xf32>
    %44 = vector.shape_cast %41 : vector<16x32xf32> to vector<2x8x32xf32>
    %45 = vector.extract_strided_slice %42 {offsets = [0, 0, 0], sizes = [2, 8, 8], strides = [1, 1, 1]} : vector<2x8x32xf32> to vector<2x8x8xf32>
    %46 = vector.extract_strided_slice %43 {offsets = [0, 0, 0], sizes = [2, 8, 8], strides = [1, 1, 1]} : vector<2x8x32xf32> to vector<2x8x8xf32>
    "tpu.trace_start"() <{level = 10 : i32, message = "bqd,bkd->bqk"}> : () -> ()
    %cst_25 = arith.constant dense<0.000000e+00> : vector<2x8x8xf32>
    %47 = tpu.matmul %45, %46, %cst_25 {dimension_numbers = #tpu.dot_dimension_numbers<[2], [2], [1], [1], [0, 0, 0, 1, 1, 1], [0], [0]>} : vector<2x8x8xf32>, vector<2x8x8xf32>, vector<2x8x8xf32> -> vector<2x8x8xf32>
    "tpu.trace_stop"() : () -> ()
    %48 = arith.addf %47, %9 : vector<2x8x8xf32>
    %cst_26 = arith.constant dense<0xFF800000> : vector<2x8xf32>
    %49 = vector.multi_reduction <maximumf>, %48, %cst_26 [2] : vector<2x8x8xf32> to vector<2x8xf32>
    %50 = vector.shape_cast %49 : vector<2x8xf32> to vector<2x8x1xf32>
    %51 = vector.broadcast %50 : vector<2x8x1xf32> to vector<2x8x8xf32>
    %52 = arith.subf %48, %51 : vector<2x8x8xf32>
    %53 = math.exp %52 : vector<2x8x8xf32>
    %cst_27 = arith.constant dense<0.000000e+00> : vector<2x8xf32>
    %54 = vector.multi_reduction <add>, %53, %cst_27 [2] : vector<2x8x8xf32> to vector<2x8xf32>
    %55 = vector.shape_cast %54 : vector<2x8xf32> to vector<2x8x1xf32>
    %56 = tpu.reciprocal %55 {approx = true} : vector<2x8x1xf32> -> vector<2x8x1xf32>
    %57 = vector.broadcast %56 : vector<2x8x1xf32> to vector<2x8x8xf32>
    %58 = arith.mulf %53, %57 : vector<2x8x8xf32>
    %59 = vector.extract_strided_slice %44 {offsets = [0, 0, 0], sizes = [2, 8, 8], strides = [1, 1, 1]} : vector<2x8x32xf32> to vector<2x8x8xf32>
    "tpu.trace_start"() <{level = 10 : i32, message = "bqk,bkd->bqd"}> : () -> ()
    %cst_28 = arith.constant dense<0.000000e+00> : vector<2x8x8xf32>
    %60 = tpu.matmul %58, %59, %cst_28 {dimension_numbers = #tpu.dot_dimension_numbers<[2], [1], [1], [2], [0, 0, 0, 1, 1, 2], [0], [0]>} : vector<2x8x8xf32>, vector<2x8x8xf32>, vector<2x8x8xf32> -> vector<2x8x8xf32>
    "tpu.trace_stop"() : () -> ()
    %61 = vector.shape_cast %60 : vector<2x8x8xf32> to vector<16x8xf32>
    %c0_29 = arith.constant 0 : index
    %c0_30 = arith.constant 0 : index
    %62 = vector.load %arg6[%c0_29, %c0_30] : memref<33x32xf32, #tpu.memory_space<vmem>>, vector<8x32xf32>
    %cst_31 = arith.constant dense<0.000000e+00> : vector<16x32xf32>
    %63 = tpu.matmul %61, %62, %cst_31 {dimension_numbers = #tpu.dot_dimension_numbers<[1], [0], [0], [1], [0, 0, 1, 1], [], []>} : vector<16x8xf32>, vector<8x32xf32>, vector<16x32xf32> -> vector<16x32xf32>
    %64 = vector.extract_strided_slice %42 {offsets = [0, 0, 8], sizes = [2, 8, 8], strides = [1, 1, 1]} : vector<2x8x32xf32> to vector<2x8x8xf32>
    %65 = vector.extract_strided_slice %43 {offsets = [0, 0, 8], sizes = [2, 8, 8], strides = [1, 1, 1]} : vector<2x8x32xf32> to vector<2x8x8xf32>
    "tpu.trace_start"() <{level = 10 : i32, message = "bqd,bkd->bqk"}> : () -> ()
    %cst_32 = arith.constant dense<0.000000e+00> : vector<2x8x8xf32>
    %66 = tpu.matmul %64, %65, %cst_32 {dimension_numbers = #tpu.dot_dimension_numbers<[2], [2], [1], [1], [0, 0, 0, 1, 1, 1], [0], [0]>} : vector<2x8x8xf32>, vector<2x8x8xf32>, vector<2x8x8xf32> -> vector<2x8x8xf32>
    "tpu.trace_stop"() : () -> ()
    %67 = arith.addf %66, %9 : vector<2x8x8xf32>
    %cst_33 = arith.constant dense<0xFF800000> : vector<2x8xf32>
    %68 = vector.multi_reduction <maximumf>, %67, %cst_33 [2] : vector<2x8x8xf32> to vector<2x8xf32>
    %69 = vector.shape_cast %68 : vector<2x8xf32> to vector<2x8x1xf32>
    %70 = vector.broadcast %69 : vector<2x8x1xf32> to vector<2x8x8xf32>
    %71 = arith.subf %67, %70 : vector<2x8x8xf32>
    %72 = math.exp %71 : vector<2x8x8xf32>
    %cst_34 = arith.constant dense<0.000000e+00> : vector<2x8xf32>
    %73 = vector.multi_reduction <add>, %72, %cst_34 [2] : vector<2x8x8xf32> to vector<2x8xf32>
    %74 = vector.shape_cast %73 : vector<2x8xf32> to vector<2x8x1xf32>
    %75 = tpu.reciprocal %74 {approx = true} : vector<2x8x1xf32> -> vector<2x8x1xf32>
    %76 = vector.broadcast %75 : vector<2x8x1xf32> to vector<2x8x8xf32>
    %77 = arith.mulf %72, %76 : vector<2x8x8xf32>
    %78 = vector.extract_strided_slice %44 {offsets = [0, 0, 8], sizes = [2, 8, 8], strides = [1, 1, 1]} : vector<2x8x32xf32> to vector<2x8x8xf32>
    "tpu.trace_start"() <{level = 10 : i32, message = "bqk,bkd->bqd"}> : () -> ()
    %cst_35 = arith.constant dense<0.000000e+00> : vector<2x8x8xf32>
    %79 = tpu.matmul %77, %78, %cst_35 {dimension_numbers = #tpu.dot_dimension_numbers<[2], [1], [1], [2], [0, 0, 0, 1, 1, 2], [0], [0]>} : vector<2x8x8xf32>, vector<2x8x8xf32>, vector<2x8x8xf32> -> vector<2x8x8xf32>
    "tpu.trace_stop"() : () -> ()
    %80 = vector.shape_cast %79 : vector<2x8x8xf32> to vector<16x8xf32>
    %c8 = arith.constant 8 : index
    %c0_36 = arith.constant 0 : index
    %81 = vector.load %arg6[%c8, %c0_36] : memref<33x32xf32, #tpu.memory_space<vmem>>, vector<8x32xf32>
    %cst_37 = arith.constant dense<0.000000e+00> : vector<16x32xf32>
    %82 = tpu.matmul %80, %81, %cst_37 {dimension_numbers = #tpu.dot_dimension_numbers<[1], [0], [0], [1], [0, 0, 1, 1], [], []>} : vector<16x8xf32>, vector<8x32xf32>, vector<16x32xf32> -> vector<16x32xf32>
    %83 = arith.addf %63, %82 : vector<16x32xf32>
    %84 = vector.extract_strided_slice %42 {offsets = [0, 0, 16], sizes = [2, 8, 8], strides = [1, 1, 1]} : vector<2x8x32xf32> to vector<2x8x8xf32>
    %85 = vector.extract_strided_slice %43 {offsets = [0, 0, 16], sizes = [2, 8, 8], strides = [1, 1, 1]} : vector<2x8x32xf32> to vector<2x8x8xf32>
    "tpu.trace_start"() <{level = 10 : i32, message = "bqd,bkd->bqk"}> : () -> ()
    %cst_38 = arith.constant dense<0.000000e+00> : vector<2x8x8xf32>
    %86 = tpu.matmul %84, %85, %cst_38 {dimension_numbers = #tpu.dot_dimension_numbers<[2], [2], [1], [1], [0, 0, 0, 1, 1, 1], [0], [0]>} : vector<2x8x8xf32>, vector<2x8x8xf32>, vector<2x8x8xf32> -> vector<2x8x8xf32>
    "tpu.trace_stop"() : () -> ()
    %87 = arith.addf %86, %9 : vector<2x8x8xf32>
    %cst_39 = arith.constant dense<0xFF800000> : vector<2x8xf32>
    %88 = vector.multi_reduction <maximumf>, %87, %cst_39 [2] : vector<2x8x8xf32> to vector<2x8xf32>
    %89 = vector.shape_cast %88 : vector<2x8xf32> to vector<2x8x1xf32>
    %90 = vector.broadcast %89 : vector<2x8x1xf32> to vector<2x8x8xf32>
    %91 = arith.subf %87, %90 : vector<2x8x8xf32>
    %92 = math.exp %91 : vector<2x8x8xf32>
    %cst_40 = arith.constant dense<0.000000e+00> : vector<2x8xf32>
    %93 = vector.multi_reduction <add>, %92, %cst_40 [2] : vector<2x8x8xf32> to vector<2x8xf32>
    %94 = vector.shape_cast %93 : vector<2x8xf32> to vector<2x8x1xf32>
    %95 = tpu.reciprocal %94 {approx = true} : vector<2x8x1xf32> -> vector<2x8x1xf32>
    %96 = vector.broadcast %95 : vector<2x8x1xf32> to vector<2x8x8xf32>
    %97 = arith.mulf %92, %96 : vector<2x8x8xf32>
    %98 = vector.extract_strided_slice %44 {offsets = [0, 0, 16], sizes = [2, 8, 8], strides = [1, 1, 1]} : vector<2x8x32xf32> to vector<2x8x8xf32>
    "tpu.trace_start"() <{level = 10 : i32, message = "bqk,bkd->bqd"}> : () -> ()
    %cst_41 = arith.constant dense<0.000000e+00> : vector<2x8x8xf32>
    %99 = tpu.matmul %97, %98, %cst_41 {dimension_numbers = #tpu.dot_dimension_numbers<[2], [1], [1], [2], [0, 0, 0, 1, 1, 2], [0], [0]>} : vector<2x8x8xf32>, vector<2x8x8xf32>, vector<2x8x8xf32> -> vector<2x8x8xf32>
    "tpu.trace_stop"() : () -> ()
    %100 = vector.shape_cast %99 : vector<2x8x8xf32> to vector<16x8xf32>
    %c16 = arith.constant 16 : index
    %c0_42 = arith.constant 0 : index
    %101 = vector.load %arg6[%c16, %c0_42] : memref<33x32xf32, #tpu.memory_space<vmem>>, vector<8x32xf32>
    %cst_43 = arith.constant dense<0.000000e+00> : vector<16x32xf32>
    %102 = tpu.matmul %100, %101, %cst_43 {dimension_numbers = #tpu.dot_dimension_numbers<[1], [0], [0], [1], [0, 0, 1, 1], [], []>} : vector<16x8xf32>, vector<8x32xf32>, vector<16x32xf32> -> vector<16x32xf32>
    %103 = arith.addf %83, %102 : vector<16x32xf32>
    %104 = vector.extract_strided_slice %42 {offsets = [0, 0, 24], sizes = [2, 8, 8], strides = [1, 1, 1]} : vector<2x8x32xf32> to vector<2x8x8xf32>
    %105 = vector.extract_strided_slice %43 {offsets = [0, 0, 24], sizes = [2, 8, 8], strides = [1, 1, 1]} : vector<2x8x32xf32> to vector<2x8x8xf32>
    "tpu.trace_start"() <{level = 10 : i32, message = "bqd,bkd->bqk"}> : () -> ()
    %cst_44 = arith.constant dense<0.000000e+00> : vector<2x8x8xf32>
    %106 = tpu.matmul %104, %105, %cst_44 {dimension_numbers = #tpu.dot_dimension_numbers<[2], [2], [1], [1], [0, 0, 0, 1, 1, 1], [0], [0]>} : vector<2x8x8xf32>, vector<2x8x8xf32>, vector<2x8x8xf32> -> vector<2x8x8xf32>
    "tpu.trace_stop"() : () -> ()
    %107 = arith.addf %106, %9 : vector<2x8x8xf32>
    %cst_45 = arith.constant dense<0xFF800000> : vector<2x8xf32>
    %108 = vector.multi_reduction <maximumf>, %107, %cst_45 [2] : vector<2x8x8xf32> to vector<2x8xf32>
    %109 = vector.shape_cast %108 : vector<2x8xf32> to vector<2x8x1xf32>
    %110 = vector.broadcast %109 : vector<2x8x1xf32> to vector<2x8x8xf32>
    %111 = arith.subf %107, %110 : vector<2x8x8xf32>
    %112 = math.exp %111 : vector<2x8x8xf32>
    %cst_46 = arith.constant dense<0.000000e+00> : vector<2x8xf32>
    %113 = vector.multi_reduction <add>, %112, %cst_46 [2] : vector<2x8x8xf32> to vector<2x8xf32>
    %114 = vector.shape_cast %113 : vector<2x8xf32> to vector<2x8x1xf32>
    %115 = tpu.reciprocal %114 {approx = true} : vector<2x8x1xf32> -> vector<2x8x1xf32>
    %116 = vector.broadcast %115 : vector<2x8x1xf32> to vector<2x8x8xf32>
    %117 = arith.mulf %112, %116 : vector<2x8x8xf32>
    %118 = vector.extract_strided_slice %44 {offsets = [0, 0, 24], sizes = [2, 8, 8], strides = [1, 1, 1]} : vector<2x8x32xf32> to vector<2x8x8xf32>
    "tpu.trace_start"() <{level = 10 : i32, message = "bqk,bkd->bqd"}> : () -> ()
    %cst_47 = arith.constant dense<0.000000e+00> : vector<2x8x8xf32>
    %119 = tpu.matmul %117, %118, %cst_47 {dimension_numbers = #tpu.dot_dimension_numbers<[2], [1], [1], [2], [0, 0, 0, 1, 1, 2], [0], [0]>} : vector<2x8x8xf32>, vector<2x8x8xf32>, vector<2x8x8xf32> -> vector<2x8x8xf32>
    "tpu.trace_stop"() : () -> ()
    %120 = vector.shape_cast %119 : vector<2x8x8xf32> to vector<16x8xf32>
    %c24 = arith.constant 24 : index
    %c0_48 = arith.constant 0 : index
    %121 = vector.load %arg6[%c24, %c0_48] : memref<33x32xf32, #tpu.memory_space<vmem>>, vector<8x32xf32>
    %cst_49 = arith.constant dense<0.000000e+00> : vector<16x32xf32>
    %122 = tpu.matmul %120, %121, %cst_49 {dimension_numbers = #tpu.dot_dimension_numbers<[1], [0], [0], [1], [0, 0, 1, 1], [], []>} : vector<16x8xf32>, vector<8x32xf32>, vector<16x32xf32> -> vector<16x32xf32>
    %123 = arith.addf %103, %122 : vector<16x32xf32>
    %c32_50 = arith.constant 32 : index
    %c0_51 = arith.constant 0 : index
    %124 = vector.load %arg6[%c32_50, %c0_51] : memref<33x32xf32, #tpu.memory_space<vmem>>, vector<1x32xf32>
    %125 = vector.broadcast %124 : vector<1x32xf32> to vector<16x32xf32>
    %126 = arith.addf %123, %125 : vector<16x32xf32>
    %127 = arith.addf %126, %1 : vector<16x32xf32>
    %cst_52 = arith.constant dense<0.000000e+00> : vector<16xf32>
    %128 = vector.multi_reduction <add>, %127, %cst_52 [1] : vector<16x32xf32> to vector<16xf32>
    %129 = vector.shape_cast %128 : vector<16xf32> to vector<16x1xf32>
    %cst_53 = arith.constant 3.200000e+01 : f32
    %130 = vector.broadcast %cst_53 : f32 to vector<16x1xf32>
    %131 = arith.divf %129, %130 : vector<16x1xf32>
    %132 = vector.broadcast %131 : vector<16x1xf32> to vector<16x32xf32>
    %133 = arith.subf %127, %132 : vector<16x32xf32>
    %134 = arith.mulf %133, %133 : vector<16x32xf32>
    %cst_54 = arith.constant dense<0.000000e+00> : vector<16xf32>
    %135 = vector.multi_reduction <add>, %134, %cst_54 [1] : vector<16x32xf32> to vector<16xf32>
    %136 = vector.shape_cast %135 : vector<16xf32> to vector<16x1xf32>
    %cst_55 = arith.constant 3.200000e+01 : f32
    %137 = vector.broadcast %cst_55 : f32 to vector<16x1xf32>
    %138 = arith.divf %136, %137 : vector<16x1xf32>
    %139 = vector.broadcast %131 : vector<16x1xf32> to vector<16x32xf32>
    %140 = arith.subf %127, %139 : vector<16x32xf32>
    %cst_56 = arith.constant 9.99999974E-6 : f32
    %141 = vector.broadcast %cst_56 : f32 to vector<16x1xf32>
    %142 = arith.addf %138, %141 : vector<16x1xf32>
    %143 = math.rsqrt %142 : vector<16x1xf32>
    %144 = vector.broadcast %143 : vector<16x1xf32> to vector<16x32xf32>
    %145 = arith.mulf %140, %144 : vector<16x32xf32>
    %c0_57 = arith.constant 0 : index
    %c0_58 = arith.constant 0 : index
    %146 = vector.load %arg7[%c0_57, %c0_58] : memref<33x32xf32, #tpu.memory_space<vmem>>, vector<32x32xf32>
    %c32_59 = arith.constant 32 : index
    %c0_60 = arith.constant 0 : index
    %147 = vector.load %arg7[%c32_59, %c0_60] : memref<33x32xf32, #tpu.memory_space<vmem>>, vector<1x32xf32>
    %cst_61 = arith.constant dense<0.000000e+00> : vector<16x32xf32>
    %148 = tpu.matmul %145, %146, %cst_61 {dimension_numbers = #tpu.dot_dimension_numbers<[1], [0], [0], [1], [0, 0, 1, 1], [], []>} : vector<16x32xf32>, vector<32x32xf32>, vector<16x32xf32> -> vector<16x32xf32>
    %149 = vector.broadcast %147 : vector<1x32xf32> to vector<16x32xf32>
    %150 = arith.addf %148, %149 : vector<16x32xf32>
    %c0_62 = arith.constant 0 : index
    %c0_63 = arith.constant 0 : index
    %151 = vector.load %arg8[%c0_62, %c0_63] : memref<33x64xf32, #tpu.memory_space<vmem>>, vector<32x64xf32>
    %c32_64 = arith.constant 32 : index
    %c0_65 = arith.constant 0 : index
    %152 = vector.load %arg8[%c32_64, %c0_65] : memref<33x64xf32, #tpu.memory_space<vmem>>, vector<1x64xf32>
    %cst_66 = arith.constant dense<0.000000e+00> : vector<16x64xf32>
    %153 = tpu.matmul %3, %151, %cst_66 {dimension_numbers = #tpu.dot_dimension_numbers<[1], [0], [0], [1], [0, 0, 1, 1], [], []>} : vector<16x32xf32>, vector<32x64xf32>, vector<16x64xf32> -> vector<16x64xf32>
    %154 = vector.broadcast %152 : vector<1x64xf32> to vector<16x64xf32>
    %155 = arith.addf %153, %154 : vector<16x64xf32>
    %156 = vector.extract_strided_slice %155 {offsets = [0, 0], sizes = [16, 32], strides = [1, 1]} : vector<16x64xf32> to vector<16x32xf32>
    %157 = vector.extract_strided_slice %155 {offsets = [0, 32], sizes = [16, 32], strides = [1, 1]} : vector<16x64xf32> to vector<16x32xf32>
    %158 = vector.shape_cast %150 : vector<16x32xf32> to vector<2x8x32xf32>
    %159 = vector.shape_cast %156 : vector<16x32xf32> to vector<2x8x32xf32>
    %160 = vector.shape_cast %157 : vector<16x32xf32> to vector<2x8x32xf32>
    %161 = vector.extract_strided_slice %158 {offsets = [0, 0, 0], sizes = [2, 8, 8], strides = [1, 1, 1]} : vector<2x8x32xf32> to vector<2x8x8xf32>
    %162 = vector.extract_strided_slice %159 {offsets = [0, 0, 0], sizes = [2, 8, 8], strides = [1, 1, 1]} : vector<2x8x32xf32> to vector<2x8x8xf32>
    "tpu.trace_start"() <{level = 10 : i32, message = "bqd,bkd->bqk"}> : () -> ()
    %cst_67 = arith.constant dense<0.000000e+00> : vector<2x8x8xf32>
    %163 = tpu.matmul %161, %162, %cst_67 {dimension_numbers = #tpu.dot_dimension_numbers<[2], [2], [1], [1], [0, 0, 0, 1, 1, 1], [0], [0]>} : vector<2x8x8xf32>, vector<2x8x8xf32>, vector<2x8x8xf32> -> vector<2x8x8xf32>
    "tpu.trace_stop"() : () -> ()
    %164 = arith.addf %163, %15 : vector<2x8x8xf32>
    %cst_68 = arith.constant dense<0xFF800000> : vector<2x8xf32>
    %165 = vector.multi_reduction <maximumf>, %164, %cst_68 [2] : vector<2x8x8xf32> to vector<2x8xf32>
    %166 = vector.shape_cast %165 : vector<2x8xf32> to vector<2x8x1xf32>
    %167 = vector.broadcast %166 : vector<2x8x1xf32> to vector<2x8x8xf32>
    %168 = arith.subf %164, %167 : vector<2x8x8xf32>
    %169 = math.exp %168 : vector<2x8x8xf32>
    %cst_69 = arith.constant dense<0.000000e+00> : vector<2x8xf32>
    %170 = vector.multi_reduction <add>, %169, %cst_69 [2] : vector<2x8x8xf32> to vector<2x8xf32>
    %171 = vector.shape_cast %170 : vector<2x8xf32> to vector<2x8x1xf32>
    %172 = tpu.reciprocal %171 {approx = true} : vector<2x8x1xf32> -> vector<2x8x1xf32>
    %173 = vector.broadcast %172 : vector<2x8x1xf32> to vector<2x8x8xf32>
    %174 = arith.mulf %169, %173 : vector<2x8x8xf32>
    %175 = vector.extract_strided_slice %160 {offsets = [0, 0, 0], sizes = [2, 8, 8], strides = [1, 1, 1]} : vector<2x8x32xf32> to vector<2x8x8xf32>
    "tpu.trace_start"() <{level = 10 : i32, message = "bqk,bkd->bqd"}> : () -> ()
    %cst_70 = arith.constant dense<0.000000e+00> : vector<2x8x8xf32>
    %176 = tpu.matmul %174, %175, %cst_70 {dimension_numbers = #tpu.dot_dimension_numbers<[2], [1], [1], [2], [0, 0, 0, 1, 1, 2], [0], [0]>} : vector<2x8x8xf32>, vector<2x8x8xf32>, vector<2x8x8xf32> -> vector<2x8x8xf32>
    "tpu.trace_stop"() : () -> ()
    %177 = vector.shape_cast %176 : vector<2x8x8xf32> to vector<16x8xf32>
    %c0_71 = arith.constant 0 : index
    %c0_72 = arith.constant 0 : index
    %178 = vector.load %arg9[%c0_71, %c0_72] : memref<33x32xf32, #tpu.memory_space<vmem>>, vector<8x32xf32>
    %cst_73 = arith.constant dense<0.000000e+00> : vector<16x32xf32>
    %179 = tpu.matmul %177, %178, %cst_73 {dimension_numbers = #tpu.dot_dimension_numbers<[1], [0], [0], [1], [0, 0, 1, 1], [], []>} : vector<16x8xf32>, vector<8x32xf32>, vector<16x32xf32> -> vector<16x32xf32>
    %180 = vector.extract_strided_slice %158 {offsets = [0, 0, 8], sizes = [2, 8, 8], strides = [1, 1, 1]} : vector<2x8x32xf32> to vector<2x8x8xf32>
    %181 = vector.extract_strided_slice %159 {offsets = [0, 0, 8], sizes = [2, 8, 8], strides = [1, 1, 1]} : vector<2x8x32xf32> to vector<2x8x8xf32>
    "tpu.trace_start"() <{level = 10 : i32, message = "bqd,bkd->bqk"}> : () -> ()
    %cst_74 = arith.constant dense<0.000000e+00> : vector<2x8x8xf32>
    %182 = tpu.matmul %180, %181, %cst_74 {dimension_numbers = #tpu.dot_dimension_numbers<[2], [2], [1], [1], [0, 0, 0, 1, 1, 1], [0], [0]>} : vector<2x8x8xf32>, vector<2x8x8xf32>, vector<2x8x8xf32> -> vector<2x8x8xf32>
    "tpu.trace_stop"() : () -> ()
    %183 = arith.addf %182, %15 : vector<2x8x8xf32>
    %cst_75 = arith.constant dense<0xFF800000> : vector<2x8xf32>
    %184 = vector.multi_reduction <maximumf>, %183, %cst_75 [2] : vector<2x8x8xf32> to vector<2x8xf32>
    %185 = vector.shape_cast %184 : vector<2x8xf32> to vector<2x8x1xf32>
    %186 = vector.broadcast %185 : vector<2x8x1xf32> to vector<2x8x8xf32>
    %187 = arith.subf %183, %186 : vector<2x8x8xf32>
    %188 = math.exp %187 : vector<2x8x8xf32>
    %cst_76 = arith.constant dense<0.000000e+00> : vector<2x8xf32>
    %189 = vector.multi_reduction <add>, %188, %cst_76 [2] : vector<2x8x8xf32> to vector<2x8xf32>
    %190 = vector.shape_cast %189 : vector<2x8xf32> to vector<2x8x1xf32>
    %191 = tpu.reciprocal %190 {approx = true} : vector<2x8x1xf32> -> vector<2x8x1xf32>
    %192 = vector.broadcast %191 : vector<2x8x1xf32> to vector<2x8x8xf32>
    %193 = arith.mulf %188, %192 : vector<2x8x8xf32>
    %194 = vector.extract_strided_slice %160 {offsets = [0, 0, 8], sizes = [2, 8, 8], strides = [1, 1, 1]} : vector<2x8x32xf32> to vector<2x8x8xf32>
    "tpu.trace_start"() <{level = 10 : i32, message = "bqk,bkd->bqd"}> : () -> ()
    %cst_77 = arith.constant dense<0.000000e+00> : vector<2x8x8xf32>
    %195 = tpu.matmul %193, %194, %cst_77 {dimension_numbers = #tpu.dot_dimension_numbers<[2], [1], [1], [2], [0, 0, 0, 1, 1, 2], [0], [0]>} : vector<2x8x8xf32>, vector<2x8x8xf32>, vector<2x8x8xf32> -> vector<2x8x8xf32>
    "tpu.trace_stop"() : () -> ()
    %196 = vector.shape_cast %195 : vector<2x8x8xf32> to vector<16x8xf32>
    %c8_78 = arith.constant 8 : index
    %c0_79 = arith.constant 0 : index
    %197 = vector.load %arg9[%c8_78, %c0_79] : memref<33x32xf32, #tpu.memory_space<vmem>>, vector<8x32xf32>
    %cst_80 = arith.constant dense<0.000000e+00> : vector<16x32xf32>
    %198 = tpu.matmul %196, %197, %cst_80 {dimension_numbers = #tpu.dot_dimension_numbers<[1], [0], [0], [1], [0, 0, 1, 1], [], []>} : vector<16x8xf32>, vector<8x32xf32>, vector<16x32xf32> -> vector<16x32xf32>
    %199 = arith.addf %179, %198 : vector<16x32xf32>
    %200 = vector.extract_strided_slice %158 {offsets = [0, 0, 16], sizes = [2, 8, 8], strides = [1, 1, 1]} : vector<2x8x32xf32> to vector<2x8x8xf32>
    %201 = vector.extract_strided_slice %159 {offsets = [0, 0, 16], sizes = [2, 8, 8], strides = [1, 1, 1]} : vector<2x8x32xf32> to vector<2x8x8xf32>
    "tpu.trace_start"() <{level = 10 : i32, message = "bqd,bkd->bqk"}> : () -> ()
    %cst_81 = arith.constant dense<0.000000e+00> : vector<2x8x8xf32>
    %202 = tpu.matmul %200, %201, %cst_81 {dimension_numbers = #tpu.dot_dimension_numbers<[2], [2], [1], [1], [0, 0, 0, 1, 1, 1], [0], [0]>} : vector<2x8x8xf32>, vector<2x8x8xf32>, vector<2x8x8xf32> -> vector<2x8x8xf32>
    "tpu.trace_stop"() : () -> ()
    %203 = arith.addf %202, %15 : vector<2x8x8xf32>
    %cst_82 = arith.constant dense<0xFF800000> : vector<2x8xf32>
    %204 = vector.multi_reduction <maximumf>, %203, %cst_82 [2] : vector<2x8x8xf32> to vector<2x8xf32>
    %205 = vector.shape_cast %204 : vector<2x8xf32> to vector<2x8x1xf32>
    %206 = vector.broadcast %205 : vector<2x8x1xf32> to vector<2x8x8xf32>
    %207 = arith.subf %203, %206 : vector<2x8x8xf32>
    %208 = math.exp %207 : vector<2x8x8xf32>
    %cst_83 = arith.constant dense<0.000000e+00> : vector<2x8xf32>
    %209 = vector.multi_reduction <add>, %208, %cst_83 [2] : vector<2x8x8xf32> to vector<2x8xf32>
    %210 = vector.shape_cast %209 : vector<2x8xf32> to vector<2x8x1xf32>
    %211 = tpu.reciprocal %210 {approx = true} : vector<2x8x1xf32> -> vector<2x8x1xf32>
    %212 = vector.broadcast %211 : vector<2x8x1xf32> to vector<2x8x8xf32>
    %213 = arith.mulf %208, %212 : vector<2x8x8xf32>
    %214 = vector.extract_strided_slice %160 {offsets = [0, 0, 16], sizes = [2, 8, 8], strides = [1, 1, 1]} : vector<2x8x32xf32> to vector<2x8x8xf32>
    "tpu.trace_start"() <{level = 10 : i32, message = "bqk,bkd->bqd"}> : () -> ()
    %cst_84 = arith.constant dense<0.000000e+00> : vector<2x8x8xf32>
    %215 = tpu.matmul %213, %214, %cst_84 {dimension_numbers = #tpu.dot_dimension_numbers<[2], [1], [1], [2], [0, 0, 0, 1, 1, 2], [0], [0]>} : vector<2x8x8xf32>, vector<2x8x8xf32>, vector<2x8x8xf32> -> vector<2x8x8xf32>
    "tpu.trace_stop"() : () -> ()
    %216 = vector.shape_cast %215 : vector<2x8x8xf32> to vector<16x8xf32>
    %c16_85 = arith.constant 16 : index
    %c0_86 = arith.constant 0 : index
    %217 = vector.load %arg9[%c16_85, %c0_86] : memref<33x32xf32, #tpu.memory_space<vmem>>, vector<8x32xf32>
    %cst_87 = arith.constant dense<0.000000e+00> : vector<16x32xf32>
    %218 = tpu.matmul %216, %217, %cst_87 {dimension_numbers = #tpu.dot_dimension_numbers<[1], [0], [0], [1], [0, 0, 1, 1], [], []>} : vector<16x8xf32>, vector<8x32xf32>, vector<16x32xf32> -> vector<16x32xf32>
    %219 = arith.addf %199, %218 : vector<16x32xf32>
    %220 = vector.extract_strided_slice %158 {offsets = [0, 0, 24], sizes = [2, 8, 8], strides = [1, 1, 1]} : vector<2x8x32xf32> to vector<2x8x8xf32>
    %221 = vector.extract_strided_slice %159 {offsets = [0, 0, 24], sizes = [2, 8, 8], strides = [1, 1, 1]} : vector<2x8x32xf32> to vector<2x8x8xf32>
    "tpu.trace_start"() <{level = 10 : i32, message = "bqd,bkd->bqk"}> : () -> ()
    %cst_88 = arith.constant dense<0.000000e+00> : vector<2x8x8xf32>
    %222 = tpu.matmul %220, %221, %cst_88 {dimension_numbers = #tpu.dot_dimension_numbers<[2], [2], [1], [1], [0, 0, 0, 1, 1, 1], [0], [0]>} : vector<2x8x8xf32>, vector<2x8x8xf32>, vector<2x8x8xf32> -> vector<2x8x8xf32>
    "tpu.trace_stop"() : () -> ()
    %223 = arith.addf %222, %15 : vector<2x8x8xf32>
    %cst_89 = arith.constant dense<0xFF800000> : vector<2x8xf32>
    %224 = vector.multi_reduction <maximumf>, %223, %cst_89 [2] : vector<2x8x8xf32> to vector<2x8xf32>
    %225 = vector.shape_cast %224 : vector<2x8xf32> to vector<2x8x1xf32>
    %226 = vector.broadcast %225 : vector<2x8x1xf32> to vector<2x8x8xf32>
    %227 = arith.subf %223, %226 : vector<2x8x8xf32>
    %228 = math.exp %227 : vector<2x8x8xf32>
    %cst_90 = arith.constant dense<0.000000e+00> : vector<2x8xf32>
    %229 = vector.multi_reduction <add>, %228, %cst_90 [2] : vector<2x8x8xf32> to vector<2x8xf32>
    %230 = vector.shape_cast %229 : vector<2x8xf32> to vector<2x8x1xf32>
    %231 = tpu.reciprocal %230 {approx = true} : vector<2x8x1xf32> -> vector<2x8x1xf32>
    %232 = vector.broadcast %231 : vector<2x8x1xf32> to vector<2x8x8xf32>
    %233 = arith.mulf %228, %232 : vector<2x8x8xf32>
    %234 = vector.extract_strided_slice %160 {offsets = [0, 0, 24], sizes = [2, 8, 8], strides = [1, 1, 1]} : vector<2x8x32xf32> to vector<2x8x8xf32>
    "tpu.trace_start"() <{level = 10 : i32, message = "bqk,bkd->bqd"}> : () -> ()
    %cst_91 = arith.constant dense<0.000000e+00> : vector<2x8x8xf32>
    %235 = tpu.matmul %233, %234, %cst_91 {dimension_numbers = #tpu.dot_dimension_numbers<[2], [1], [1], [2], [0, 0, 0, 1, 1, 2], [0], [0]>} : vector<2x8x8xf32>, vector<2x8x8xf32>, vector<2x8x8xf32> -> vector<2x8x8xf32>
    "tpu.trace_stop"() : () -> ()
    %236 = vector.shape_cast %235 : vector<2x8x8xf32> to vector<16x8xf32>
    %c24_92 = arith.constant 24 : index
    %c0_93 = arith.constant 0 : index
    %237 = vector.load %arg9[%c24_92, %c0_93] : memref<33x32xf32, #tpu.memory_space<vmem>>, vector<8x32xf32>
    %cst_94 = arith.constant dense<0.000000e+00> : vector<16x32xf32>
    %238 = tpu.matmul %236, %237, %cst_94 {dimension_numbers = #tpu.dot_dimension_numbers<[1], [0], [0], [1], [0, 0, 1, 1], [], []>} : vector<16x8xf32>, vector<8x32xf32>, vector<16x32xf32> -> vector<16x32xf32>
    %239 = arith.addf %219, %238 : vector<16x32xf32>
    %c32_95 = arith.constant 32 : index
    %c0_96 = arith.constant 0 : index
    %240 = vector.load %arg9[%c32_95, %c0_96] : memref<33x32xf32, #tpu.memory_space<vmem>>, vector<1x32xf32>
    %241 = vector.broadcast %240 : vector<1x32xf32> to vector<16x32xf32>
    %242 = arith.addf %239, %241 : vector<16x32xf32>
    %243 = arith.addf %242, %127 : vector<16x32xf32>
    %cst_97 = arith.constant dense<0.000000e+00> : vector<16xf32>
    %244 = vector.multi_reduction <add>, %243, %cst_97 [1] : vector<16x32xf32> to vector<16xf32>
    %245 = vector.shape_cast %244 : vector<16xf32> to vector<16x1xf32>
    %cst_98 = arith.constant 3.200000e+01 : f32
    %246 = vector.broadcast %cst_98 : f32 to vector<16x1xf32>
    %247 = arith.divf %245, %246 : vector<16x1xf32>
    %248 = vector.broadcast %247 : vector<16x1xf32> to vector<16x32xf32>
    %249 = arith.subf %243, %248 : vector<16x32xf32>
    %250 = arith.mulf %249, %249 : vector<16x32xf32>
    %cst_99 = arith.constant dense<0.000000e+00> : vector<16xf32>
    %251 = vector.multi_reduction <add>, %250, %cst_99 [1] : vector<16x32xf32> to vector<16xf32>
    %252 = vector.shape_cast %251 : vector<16xf32> to vector<16x1xf32>
    %cst_100 = arith.constant 3.200000e+01 : f32
    %253 = vector.broadcast %cst_100 : f32 to vector<16x1xf32>
    %254 = arith.divf %252, %253 : vector<16x1xf32>
    %255 = vector.broadcast %247 : vector<16x1xf32> to vector<16x32xf32>
    %256 = arith.subf %243, %255 : vector<16x32xf32>
    %cst_101 = arith.constant 9.99999974E-6 : f32
    %257 = vector.broadcast %cst_101 : f32 to vector<16x1xf32>
    %258 = arith.addf %254, %257 : vector<16x1xf32>
    %259 = math.rsqrt %258 : vector<16x1xf32>
    %260 = vector.broadcast %259 : vector<16x1xf32> to vector<16x32xf32>
    %261 = arith.mulf %256, %260 : vector<16x32xf32>
    %c0_102 = arith.constant 0 : index
    %c0_103 = arith.constant 0 : index
    %262 = vector.load %arg10[%c0_102, %c0_103] : memref<33x128xf32, #tpu.memory_space<vmem>>, vector<32x128xf32>
    %c32_104 = arith.constant 32 : index
    %c0_105 = arith.constant 0 : index
    %263 = vector.load %arg10[%c32_104, %c0_105] : memref<33x128xf32, #tpu.memory_space<vmem>>, vector<1x128xf32>
    %cst_106 = arith.constant dense<0.000000e+00> : vector<16x128xf32>
    %264 = tpu.matmul %261, %262, %cst_106 {dimension_numbers = #tpu.dot_dimension_numbers<[1], [0], [0], [1], [0, 0, 1, 1], [], []>} : vector<16x32xf32>, vector<32x128xf32>, vector<16x128xf32> -> vector<16x128xf32>
    %265 = vector.broadcast %263 : vector<1x128xf32> to vector<16x128xf32>
    %266 = arith.addf %264, %265 : vector<16x128xf32>
    %cst_107 = arith.constant 0.000000e+00 : f32
    %267 = vector.broadcast %cst_107 : f32 to vector<16x128xf32>
    %268 = arith.maximumf %266, %267 : vector<16x128xf32>
    %c0_108 = arith.constant 0 : index
    %c0_109 = arith.constant 0 : index
    %269 = vector.load %arg11[%c0_108, %c0_109] : memref<129x32xf32, #tpu.memory_space<vmem>>, vector<128x32xf32>
    %c128 = arith.constant 128 : index
    %c0_110 = arith.constant 0 : index
    %270 = vector.load %arg11[%c128, %c0_110] : memref<129x32xf32, #tpu.memory_space<vmem>>, vector<1x32xf32>
    %cst_111 = arith.constant dense<0.000000e+00> : vector<16x32xf32>
    %271 = tpu.matmul %268, %269, %cst_111 {dimension_numbers = #tpu.dot_dimension_numbers<[1], [0], [0], [1], [0, 0, 1, 1], [], []>} : vector<16x128xf32>, vector<128x32xf32>, vector<16x32xf32> -> vector<16x32xf32>
    %272 = vector.broadcast %270 : vector<1x32xf32> to vector<16x32xf32>
    %273 = arith.addf %271, %272 : vector<16x32xf32>
    %274 = arith.addf %273, %243 : vector<16x32xf32>
    %275 = vector.shape_cast %274 : vector<16x32xf32> to vector<2x8x32xf32>
    %c0_112 = arith.constant 0 : index
    %c0_113 = arith.constant 0 : index
    %c0_114 = arith.constant 0 : index
    %276 = vector.load %arg12[%c0_112, %c0_113, %c0_114] : memref<2x8x32xf32, #tpu.memory_space<vmem>>, vector<2x8x32xf32>
    tpu.vector_store %arg12[%c0_112, %c0_113, %c0_114], %275 {strides = array<i32>} : memref<2x8x32xf32, #tpu.memory_space<vmem>>, vector<2x8x32xf32>,
    return
  }
  func.func @transform_0(%arg0: i32) -> (i32, i32, i32) {
    %c0_i32 = arith.constant 0 : i32
    %c0_i32_0 = arith.constant 0 : i32
    %c0_i32_1 = arith.constant 0 : i32
    return %arg0, %c0_i32, %c0_i32_0 : i32, i32, i32
  }
  func.func @transform_1(%arg0: i32) -> (i32, i32, i32) {
    %c0_i32 = arith.constant 0 : i32
    %c0_i32_0 = arith.constant 0 : i32
    %c0_i32_1 = arith.constant 0 : i32
    return %arg0, %c0_i32, %c0_i32_0 : i32, i32, i32
  }
  func.func @transform_2(%arg0: i32) -> (i32, i32, i32) {
    %c0_i32 = arith.constant 0 : i32
    %c0_i32_0 = arith.constant 0 : i32
    %c0_i32_1 = arith.constant 0 : i32
    return %arg0, %c0_i32, %c0_i32_0 : i32, i32, i32
  }
  func.func @transform_3(%arg0: i32) -> (i32, i32, i32) {
    %c0_i32 = arith.constant 0 : i32
    %c0_i32_0 = arith.constant 0 : i32
    %c0_i32_1 = arith.constant 0 : i32
    return %arg0, %c0_i32, %c0_i32_0 : i32, i32, i32
  }
  func.func @transform_4(%arg0: i32) -> (i32, i32) {
    %c0_i32 = arith.constant 0 : i32
    %c0_i32_0 = arith.constant 0 : i32
    %c0_i32_1 = arith.constant 0 : i32
    return %c0_i32, %c0_i32_0 : i32, i32
  }
  func.func @transform_5(%arg0: i32) -> (i32, i32) {
    %c0_i32 = arith.constant 0 : i32
    %c0_i32_0 = arith.constant 0 : i32
    %c0_i32_1 = arith.constant 0 : i32
    return %c0_i32, %c0_i32_0 : i32, i32
  }
  func.func @transform_6(%arg0: i32) -> (i32, i32) {
    %c0_i32 = arith.constant 0 : i32
    %c0_i32_0 = arith.constant 0 : i32
    %c0_i32_1 = arith.constant 0 : i32
    return %c0_i32, %c0_i32_0 : i32, i32
  }
  func.func @transform_7(%arg0: i32) -> (i32, i32) {
    %c0_i32 = arith.constant 0 : i32
    %c0_i32_0 = arith.constant 0 : i32
    %c0_i32_1 = arith.constant 0 : i32
    return %c0_i32, %c0_i32_0 : i32, i32
  }
  func.func @transform_8(%arg0: i32) -> (i32, i32) {
    %c0_i32 = arith.constant 0 : i32
    %c0_i32_0 = arith.constant 0 : i32
    %c0_i32_1 = arith.constant 0 : i32
    return %c0_i32, %c0_i32_0 : i32, i32
  }
  func.func @transform_9(%arg0: i32) -> (i32, i32) {
    %c0_i32 = arith.constant 0 : i32
    %c0_i32_0 = arith.constant 0 : i32
    %c0_i32_1 = arith.constant 0 : i32
    return %c0_i32, %c0_i32_0 : i32, i32
  }
  func.func @transform_10(%arg0: i32) -> (i32, i32) {
    %c0_i32 = arith.constant 0 : i32
    %c0_i32_0 = arith.constant 0 : i32
    %c0_i32_1 = arith.constant 0 : i32
    return %c0_i32, %c0_i32_0 : i32, i32
  }
  func.func @transform_11(%arg0: i32) -> (i32, i32, i32) {
    %c0_i32 = arith.constant 0 : i32
    %c0_i32_0 = arith.constant 0 : i32
    %c0_i32_1 = arith.constant 0 : i32
    return %arg0, %c0_i32, %c0_i32_0 : i32, i32, i32
  }
}

</mosaic_0001>

<llo_original>
// kernel: tpu_custom_call.1
$region0: #{tpu_custom_call.1}
  #allocation0 [shape = 'u32[]', space=smem, size = 0x4, offset = 0x4, fixed_abs, tag = 'smem constant byte address 0x4 - core index']
  #allocation1 [shape = 'u32[72,128]{1,0:T(1,128)}', space=vmem, size = 0x9000, scoped, tag = 'internal scratch']
  %s0 = inlined_call_operand.vmem [shape: f32[2,8,32], index: 0, kind: input, shape index: {}]
  %s1 = inlined_call_operand.vmem [shape: f32[2,8,32], index: 1, kind: input, shape index: {}]
  %s2 = inlined_call_operand.vmem [shape: f32[2,8,8], index: 2, kind: input, shape index: {}]
  %s3 = inlined_call_operand.vmem [shape: f32[2,8,8], index: 3, kind: input, shape index: {}]
  %s4 = inlined_call_operand.vmem [shape: f32[33,96], index: 4, kind: input, shape index: {}]
  %s5 = inlined_call_operand.vmem [shape: f32[33,32], index: 5, kind: input, shape index: {}]
  %s6 = inlined_call_operand.vmem [shape: f32[33,32], index: 6, kind: input, shape index: {}]
  %s7 = inlined_call_operand.vmem [shape: f32[33,64], index: 7, kind: input, shape index: {}]
  %s8 = inlined_call_operand.vmem [shape: f32[33,32], index: 8, kind: input, shape index: {}]
  %s9 = inlined_call_operand.vmem [shape: f32[33,128], index: 9, kind: input, shape index: {}]
  %s10 = inlined_call_operand.vmem [shape: f32[129,32], index: 10, kind: input, shape index: {}]
  %s11 = inlined_call_operand.hbm [shape: f32[2,8,32], index: 11, kind: output, shape index: {}]
  %s12 = sld [smem:[#allocation0]]
  $region54: #{tpu_custom_call.1} parent=0
    _
  %s14 = ssub.s32 1, %s12
  %s15 = scalar_select 0, %s14, %s12
  $region1: #{tpu_custom_call.1} parent=0
    #allocation2 [shape = 'u8[8192]{0}', space=vmem, size = 0x2000, scoped, tag = 'output window, operand 0, single buffered']
    #allocation3 [shape = 's32[1]{0}', space=sflag, size = 0x4, scoped, tag = 'scoped memory for tpu_custom_call.1']
    %16 = vsyncpa [#allocation3], 0
    // Predicated region
    $region2: #{tpu_custom_call.1} parent=1 // pred_check
      _
    $region3: #{tpu_custom_call.1} parent=1 // pred_check_branch
      %18 = sbr.rel (0) target = $region5
    $region4: #{tpu_custom_call.1} parent=1 // pred_region
      _
    $region5: #{tpu_custom_call.1} parent=1 // pred_fallthru
      _
    // Predicated region
    $region6: #{tpu_custom_call.1} parent=1 // pred_check
      _
    $region7: #{tpu_custom_call.1} parent=1 // pred_check_branch
      %20 = sbr.rel (0) target = $region9
    $region8: #{tpu_custom_call.1} parent=1 // pred_region
      _
    $region9: #{tpu_custom_call.1} parent=1 // pred_fallthru
      _
    // Predicated region
    $region10: #{tpu_custom_call.1} parent=1 // pred_check
      _
    $region11: #{tpu_custom_call.1} parent=1 // pred_check_branch
      %22 = sbr.rel (0) target = $region13
    $region12: #{tpu_custom_call.1} parent=1 // pred_region
      _
    $region13: #{tpu_custom_call.1} parent=1 // pred_fallthru
      _
    // Predicated region
    $region14: #{tpu_custom_call.1} parent=1 // pred_check
      _
    $region15: #{tpu_custom_call.1} parent=1 // pred_check_branch
      %24 = sbr.rel (0) target = $region17
    $region16: #{tpu_custom_call.1} parent=1 // pred_region
      _
    $region17: #{tpu_custom_call.1} parent=1 // pred_fallthru
      _
    // Predicated region
    $region18: #{tpu_custom_call.1} parent=1 // pred_check
      _
    $region19: #{tpu_custom_call.1} parent=1 // pred_check_branch
      %26 = sbr.rel (0) target = $region21
    $region20: #{tpu_custom_call.1} parent=1 // pred_region
      _
    $region21: #{tpu_custom_call.1} parent=1 // pred_fallthru
      _
    // Predicated region
    $region22: #{tpu_custom_call.1} parent=1 // pred_check
      _
    $region23: #{tpu_custom_call.1} parent=1 // pred_check_branch
      %28 = sbr.rel (0) target = $region25
    $region24: #{tpu_custom_call.1} parent=1 // pred_region
      _
    $region25: #{tpu_custom_call.1} parent=1 // pred_fallthru
      _
    // Predicated region
    $region26: #{tpu_custom_call.1} parent=1 // pred_check
      _
    $region27: #{tpu_custom_call.1} parent=1 // pred_check_branch
      %30 = sbr.rel (0) target = $region29
    $region28: #{tpu_custom_call.1} parent=1 // pred_region
      _
    $region29: #{tpu_custom_call.1} parent=1 // pred_fallthru
      _
    // Predicated region
    $region30: #{tpu_custom_call.1} parent=1 // pred_check
      _
    $region31: #{tpu_custom_call.1} parent=1 // pred_check_branch
      %32 = sbr.rel (0) target = $region33
    $region32: #{tpu_custom_call.1} parent=1 // pred_region
      _
    $region33: #{tpu_custom_call.1} parent=1 // pred_fallthru
      _
    // Predicated region
    $region34: #{tpu_custom_call.1} parent=1 // pred_check
      _
    $region35: #{tpu_custom_call.1} parent=1 // pred_check_branch
      %34 = sbr.rel (0) target = $region37
    $region36: #{tpu_custom_call.1} parent=1 // pred_region
      _
    $region37: #{tpu_custom_call.1} parent=1 // pred_fallthru
      _
    // Predicated region
    $region38: #{tpu_custom_call.1} parent=1 // pred_check
      _
    $region39: #{tpu_custom_call.1} parent=1 // pred_check_branch
      %36 = sbr.rel (0) target = $region41
    $region40: #{tpu_custom_call.1} parent=1 // pred_region
      _
    $region41: #{tpu_custom_call.1} parent=1 // pred_fallthru
      _
    // Predicated region
    $region42: #{tpu_custom_call.1} parent=1 // pred_check
      _
    $region43: #{tpu_custom_call.1} parent=1 // pred_check_branch
      %38 = sbr.rel (0) target = $region45
    $region44: #{tpu_custom_call.1} parent=1 // pred_region
      _
    $region45: #{tpu_custom_call.1} parent=1 // pred_fallthru
      _
    %v39 = vld [vmem:[%s0] sm:$0xff]
    %v40 = vld [vmem:[%s0 + $0x8] sm:$0xff]
    %v41 = vld [vmem:[%s1] sm:$0xff]
    %v42 = vld [vmem:[%s1 + $0x8] sm:$0xff]
    %v43 = vld [vmem:[%s2] sm:$0xff]
    %v44 = vld [vmem:[%s2 + $0x8] sm:$0xff]
    %vm45 = vcmp.gt.f32.partialorder %v43, 0.0
    %vm46 = vcmp.gt.f32.partialorder %v44, 0.0
    %v47 = vsel %vm45, 0.0, -1e+09
    %v48 = vsel %vm46, 0.0, -1e+09
    %v49 = vld [vmem:[%s3] sm:$0xff]
    %v50 = vld [vmem:[%s3 + $0x8] sm:$0xff]
    %vm51 = vcmp.gt.f32.partialorder %v49, 0.0
    %vm52 = vcmp.gt.f32.partialorder %v50, 0.0
    %v53 = vsel %vm51, 0.0, -1e+09
    %v54 = vsel %vm52, 0.0, -1e+09
    %vm55 = vcmask 261120
    %v56 = vsel %vm55, %v39, 0.0
    %57 = vadd.xlane.f32.xlu0 %v56
    %v58 = vpop.xlane.xlu0 %57
    %v59 = vsel %vm55, %v40, 0.0
    %60 = vadd.xlane.f32.xlu0 %v59
    %v61 = vpop.xlane.xlu0 %60
    %v62 = vrcp.pop 32.0
    %v63 = vmul.f32 32.0, %v62
    %v64 = vsub.f32 1.0, %v63
    %v65 = vmul.f32 %v62, %v64
    %v66 = vadd.f32 %v62, %v65
    %vm67 = vweird.f32 %v62
    %v68 = vsel %vm67, %v62, %v66
    %v69 = vmul.f32 %v58, %v68
    %v70 = vmul.f32 %v61, %v68
    %v71 = vsub.f32 %v39, %v69
    %v72 = vsub.f32 %v40, %v70
    %v73 = vmul.f32 %v71, %v71
    %v74 = vmul.f32 %v72, %v72
    %v75 = vsel %vm55, %v73, 0.0
    %76 = vadd.xlane.f32.xlu0 %v75
    %v77 = vpop.xlane.xlu0 %76
    %v78 = vsel %vm55, %v74, 0.0
    %79 = vadd.xlane.f32.xlu0 %v78
    %v80 = vpop.xlane.xlu0 %79
    %v81 = vmul.f32 %v77, %v68
    %v82 = vmul.f32 %v80, %v68
    %v83 = vadd.f32 %v81, 1e-05
    %v84 = vadd.f32 %v82, 1e-05
    %v85 = vrsqrt.pop %v83
    %v86 = vmul.f32 %v85, %v83
    %v87 = vmul.f32 %v86, %v85
    %v88 = vmul.f32 0.5, %v87
    %v89 = vsub.f32 1.5, %v88
    %v90 = vmul.f32 %v85, %v89
    %vm91 = vweird.f32 %v83
    %vm92 = vweird.f32 %v85
    %vm93 = vmor %vm91, %vm92
    %v94 = vsel %vm93, %v85, %v90
    %v95 = vrsqrt.pop %v84
    %v96 = vmul.f32 %v95, %v84
    %v97 = vmul.f32 %v96, %v95
    %v98 = vmul.f32 0.5, %v97
    %v99 = vsub.f32 1.5, %v98
    %v100 = vmul.f32 %v95, %v99
    %vm101 = vweird.f32 %v84
    %vm102 = vweird.f32 %v95
    %vm103 = vmor %vm101, %vm102
    %v104 = vsel %vm103, %v95, %v100
    %v105 = vmul.f32 %v71, %v94
    %v106 = vmul.f32 %v72, %v104
    %v107 = vld [vmem:[%s4] sm:$0xff]
    %v108 = vld [vmem:[%s4 + $0x8] sm:$0xff]
    %v109 = vld [vmem:[%s4 + $0x10] sm:$0xff]
    %v110 = vld [vmem:[%s4 + $0x18] sm:$0xff]
    %v111 = vld [vmem:[%s4 + $0x20] sm:$0x1]
    %v112 = vperm.slane %v111, 0
    %v114 = vsel %vm55, %v105, 0
    %v117 = vsel %vm55, %v106, 0
    %119 = vmatpush.msra.mxu0 0.0
    %120 = vmatpush.msra.mxu0 0.0
    %121 = vmatpush.msra.mxu0 0.0
    %122 = vmatpush.msra.mxu0 0.0
    %123 = vmatpush.msra.mxu0 0.0
    %124 = vmatpush.msra.mxu0 0.0
    %125 = vmatpush.msra.mxu0 0.0
    %126 = vmatpush.msra.mxu0 0.0
    %127 = vmatpush.msra.mxu0 0.0
    %128 = vmatpush.msra.mxu0 0.0
    %129 = vmatpush.msra.mxu0 0.0
    %130 = vmatpush.msra.mxu0 0.0
    %131 = vmatpush.msra.mxu0 %v110
    %132 = vmatpush.msra.mxu0 %v109
    %133 = vmatpush.msra.mxu0 %v108
    %134 = vmatpush.msra.mxu0 %v107
    %135 = vmatmul.f32.gmra.mxu0 %v114
    %v136 = vpop.f32.mrf.mxu0
    %v137 = vadd.f32 %v112, %v136
    %138 = vmatmul.f32.gmra.mxu0 %v117
    %v139 = vpop.f32.mrf.mxu0
    %v140 = vadd.f32 %v112, %v139
    %141 = vdwg.mxu0
    %143 = vrot.lane.b32.xlu0 %v137, 96
    %v144 = vpop.permute.xlu0 %143
    %vm145 = vcmask 64512
    %v146 = vsel %vm145, %v137, 0
    %v148 = vsel %vm145, %v144, 0
    %150 = vmatpush.xpose.msra.mxu0 0.0
    %151 = vmatpush.xpose.msra.mxu0 0.0
    %152 = vmatpush.xpose.msra.mxu0 0.0
    %153 = vmatpush.xpose.msra.mxu0 0.0
    %154 = vmatpush.xpose.msra.mxu0 0.0
    %155 = vmatpush.xpose.msra.mxu0 0.0
    %156 = vmatpush.xpose.msra.mxu0 0.0
    %157 = vmatpush.xpose.msra.mxu0 0.0
    %158 = vmatpush.xpose.msra.mxu0 0.0
    %159 = vmatpush.xpose.msra.mxu0 0.0
    %160 = vmatpush.xpose.msra.mxu0 0.0
    %161 = vmatpush.xpose.msra.mxu0 0.0
    %162 = vmatpush.xpose.msra.mxu0 0.0
    %163 = vmatpush.xpose.msra.mxu0 0.0
    %164 = vmatpush.xpose.msra.mxu0 0.0
    %165 = vmatpush.xpose.msra.mxu0 %v148
    %166 = vmatmul.f32.gmra.mxu0 %v146
    %v167 = vpop.f32.mrf.mxu0
    %v168 = vadd.f32 %v47, %v167
    %169 = vdwg.mxu0
    %171 = vrot.lane.b32.xlu0 %v140, 96
    %v172 = vpop.permute.xlu0 %171
    %v173 = vsel %vm145, %v140, 0
    %v175 = vsel %vm145, %v172, 0
    %177 = vmatpush.xpose.msra.mxu0 0.0
    %178 = vmatpush.xpose.msra.mxu0 0.0
    %179 = vmatpush.xpose.msra.mxu0 0.0
    %180 = vmatpush.xpose.msra.mxu0 0.0
    %181 = vmatpush.xpose.msra.mxu0 0.0
    %182 = vmatpush.xpose.msra.mxu0 0.0
    %183 = vmatpush.xpose.msra.mxu0 0.0
    %184 = vmatpush.xpose.msra.mxu0 0.0
    %185 = vmatpush.xpose.msra.mxu0 0.0
    %186 = vmatpush.xpose.msra.mxu0 0.0
    %187 = vmatpush.xpose.msra.mxu0 0.0
    %188 = vmatpush.xpose.msra.mxu0 0.0
    %189 = vmatpush.xpose.msra.mxu0 0.0
    %190 = vmatpush.xpose.msra.mxu0 0.0
    %191 = vmatpush.xpose.msra.mxu0 0.0
    %192 = vmatpush.xpose.msra.mxu0 %v175
    %193 = vmatmul.f32.gmra.mxu0 %v173
    %v194 = vpop.f32.mrf.mxu0
    %v195 = vadd.f32 %v48, %v194
    %196 = vdwg.mxu0
    %v197 = vsel %vm145, %v168, -inf
    %198 = vmax.xlane.f32.xlu0 %v197
    %v199 = vpop.xlane.xlu0 %198
    %v200 = vsel %vm145, %v195, -inf
    %201 = vmax.xlane.f32.xlu0 %v200
    %v202 = vpop.xlane.xlu0 %201
    %v203 = vsub.f32 %v168, %v199
    %v204 = vsub.f32 %v195, %v202
    %v205 = vmul.f32 %v203, 1.442695
    %v206 = vpow.pop %v205
    %v207 = vmul.f32 %v204, 1.442695
    %v208 = vpow.pop %v207
    %v209 = vsel %vm145, %v206, 0.0
    %210 = vadd.xlane.f32.xlu0 %v209
    %v211 = vpop.xlane.xlu0 %210
    %v212 = vsel %vm145, %v208, 0.0
    %213 = vadd.xlane.f32.xlu0 %v212
    %v214 = vpop.xlane.xlu0 %213
    %v215 = vrcp.pop %v211
    %v216 = vrcp.pop %v214
    %v217 = vmul.f32 %v206, %v215
    %v218 = vmul.f32 %v208, %v216
    %219 = vrot.lane.b32.xlu0 %v137, 64
    %v220 = vpop.permute.xlu0 %219
    %v223 = vsel %vm145, %v217, 0
    %225 = vmatpush.msra.mxu0 0.0
    %226 = vmatpush.msra.mxu0 0.0
    %227 = vmatpush.msra.mxu0 0.0
    %228 = vmatpush.msra.mxu0 0.0
    %229 = vmatpush.msra.mxu0 0.0
    %230 = vmatpush.msra.mxu0 0.0
    %231 = vmatpush.msra.mxu0 0.0
    %232 = vmatpush.msra.mxu0 0.0
    %233 = vmatpush.msra.mxu0 0.0
    %234 = vmatpush.msra.mxu0 0.0
    %235 = vmatpush.msra.mxu0 0.0
    %236 = vmatpush.msra.mxu0 0.0
    %237 = vmatpush.msra.mxu0 0.0
    %238 = vmatpush.msra.mxu0 0.0
    %239 = vmatpush.msra.mxu0 0.0
    %240 = vmatpush.msra.mxu0 %v220
    %241 = vmatmul.f32.gmra.mxu0 %v223
    %v242 = vpop.f32.mrf.mxu0
    %v243 = vadd.f32 0.0, %v242
    %244 = vdwg.mxu0
    %245 = vrot.lane.b32.xlu0 %v140, 64
    %v246 = vpop.permute.xlu0 %245
    %v249 = vsel %vm145, %v218, 0
    %251 = vmatpush.msra.mxu0 0.0
    %252 = vmatpush.msra.mxu0 0.0
    %253 = vmatpush.msra.mxu0 0.0
    %254 = vmatpush.msra.mxu0 0.0
    %255 = vmatpush.msra.mxu0 0.0
    %256 = vmatpush.msra.mxu0 0.0
    %257 = vmatpush.msra.mxu0 0.0
    %258 = vmatpush.msra.mxu0 0.0
    %259 = vmatpush.msra.mxu0 0.0
    %260 = vmatpush.msra.mxu0 0.0
    %261 = vmatpush.msra.mxu0 0.0
    %262 = vmatpush.msra.mxu0 0.0
    %263 = vmatpush.msra.mxu0 0.0
    %264 = vmatpush.msra.mxu0 0.0
    %265 = vmatpush.msra.mxu0 0.0
    %266 = vmatpush.msra.mxu0 %v246
    %267 = vmatmul.f32.gmra.mxu0 %v249
    %v268 = vpop.f32.mrf.mxu0
    %v269 = vadd.f32 0.0, %v268
    %270 = vdwg.mxu0
    %v271 = vld [vmem:[%s5] sm:$0xff]
    %272 = vrot.lane.b32.xlu0 %v137, 120
    %v273 = vpop.permute.xlu0 %272
    %274 = vrot.lane.b32.xlu0 %v137, 88
    %v275 = vpop.permute.xlu0 %274
    %v276 = vsel %vm145, %v273, 0
    %v278 = vsel %vm145, %v275, 0
    %280 = vmatpush.xpose.msra.mxu0 0.0
    %281 = vmatpush.xpose.msra.mxu0 0.0
    %282 = vmatpush.xpose.msra.mxu0 0.0
    %283 = vmatpush.xpose.msra.mxu0 0.0
    %284 = vmatpush.xpose.msra.mxu0 0.0
    %285 = vmatpush.xpose.msra.mxu0 0.0
    %286 = vmatpush.xpose.msra.mxu0 0.0
    %287 = vmatpush.xpose.msra.mxu0 0.0
    %288 = vmatpush.xpose.msra.mxu0 0.0
    %289 = vmatpush.xpose.msra.mxu0 0.0
    %290 = vmatpush.xpose.msra.mxu0 0.0
    %291 = vmatpush.xpose.msra.mxu0 0.0
    %292 = vmatpush.xpose.msra.mxu0 0.0
    %293 = vmatpush.xpose.msra.mxu0 0.0
    %294 = vmatpush.xpose.msra.mxu0 0.0
    %295 = vmatpush.xpose.msra.mxu0 %v278
    %296 = vmatmul.f32.gmra.mxu0 %v276
    %v297 = vpop.f32.mrf.mxu0
    %v298 = vadd.f32 %v47, %v297
    %299 = vdwg.mxu0
    %300 = vrot.lane.b32.xlu0 %v140, 120
    %v301 = vpop.permute.xlu0 %300
    %302 = vrot.lane.b32.xlu0 %v140, 88
    %v303 = vpop.permute.xlu0 %302
    %v304 = vsel %vm145, %v301, 0
    %v306 = vsel %vm145, %v303, 0
    %308 = vmatpush.xpose.msra.mxu0 0.0
    %309 = vmatpush.xpose.msra.mxu0 0.0
    %310 = vmatpush.xpose.msra.mxu0 0.0
    %311 = vmatpush.xpose.msra.mxu0 0.0
    %312 = vmatpush.xpose.msra.mxu0 0.0
    %313 = vmatpush.xpose.msra.mxu0 0.0
    %314 = vmatpush.xpose.msra.mxu0 0.0
    %315 = vmatpush.xpose.msra.mxu0 0.0
    %316 = vmatpush.xpose.msra.mxu0 0.0
    %317 = vmatpush.xpose.msra.mxu0 0.0
    %318 = vmatpush.xpose.msra.mxu0 0.0
    %319 = vmatpush.xpose.msra.mxu0 0.0
    %320 = vmatpush.xpose.msra.mxu0 0.0
    %321 = vmatpush.xpose.msra.mxu0 0.0
    %322 = vmatpush.xpose.msra.mxu0 0.0
    %323 = vmatpush.xpose.msra.mxu0 %v306
    %324 = vmatmul.f32.gmra.mxu0 %v304
    %v325 = vpop.f32.mrf.mxu0
    %v326 = vadd.f32 %v48, %v325
    %327 = vdwg.mxu0
    %v328 = vsel %vm145, %v298, -inf
    %329 = vmax.xlane.f32.xlu0 %v328
    %v330 = vpop.xlane.xlu0 %329
    %v331 = vsel %vm145, %v326, -inf
    %332 = vmax.xlane.f32.xlu0 %v331
    %v333 = vpop.xlane.xlu0 %332
    %v334 = vsub.f32 %v298, %v330
    %v335 = vsub.f32 %v326, %v333
    %v336 = vmul.f32 %v334, 1.442695
    %v337 = vpow.pop %v336
    %v338 = vmul.f32 %v335, 1.442695
    %v339 = vpow.pop %v338
    %v340 = vsel %vm145, %v337, 0.0
    %341 = vadd.xlane.f32.xlu0 %v340
    %v342 = vpop.xlane.xlu0 %341
    %v343 = vsel %vm145, %v339, 0.0
    %344 = vadd.xlane.f32.xlu0 %v343
    %v345 = vpop.xlane.xlu0 %344
    %v346 = vrcp.pop %v342
    %v347 = vrcp.pop %v345
    %v348 = vmul.f32 %v337, %v346
    %v349 = vmul.f32 %v339, %v347
    %350 = vrot.lane.b32.xlu0 %v137, 56
    %v351 = vpop.permute.xlu0 %350
    %v354 = vsel %vm145, %v348, 0
    %356 = vmatpush.msra.mxu0 0.0
    %357 = vmatpush.msra.mxu0 0.0
    %358 = vmatpush.msra.mxu0 0.0
    %359 = vmatpush.msra.mxu0 0.0
    %360 = vmatpush.msra.mxu0 0.0
    %361 = vmatpush.msra.mxu0 0.0
    %362 = vmatpush.msra.mxu0 0.0
    %363 = vmatpush.msra.mxu0 0.0
    %364 = vmatpush.msra.mxu0 0.0
    %365 = vmatpush.msra.mxu0 0.0
    %366 = vmatpush.msra.mxu0 0.0
    %367 = vmatpush.msra.mxu0 0.0
    %368 = vmatpush.msra.mxu0 0.0
    %369 = vmatpush.msra.mxu0 0.0
    %370 = vmatpush.msra.mxu0 0.0
    %371 = vmatpush.msra.mxu0 %v351
    %372 = vmatmul.f32.gmra.mxu0 %v354
    %v373 = vpop.f32.mrf.mxu0
    %v374 = vadd.f32 0.0, %v373
    %375 = vdwg.mxu0
    %376 = vrot.lane.b32.xlu0 %v140, 56
    %v377 = vpop.permute.xlu0 %376
    %v380 = vsel %vm145, %v349, 0
    %382 = vmatpush.msra.mxu0 0.0
    %383 = vmatpush.msra.mxu0 0.0
    %384 = vmatpush.msra.mxu0 0.0
    %385 = vmatpush.msra.mxu0 0.0
    %386 = vmatpush.msra.mxu0 0.0
    %387 = vmatpush.msra.mxu0 0.0
    %388 = vmatpush.msra.mxu0 0.0
    %389 = vmatpush.msra.mxu0 0.0
    %390 = vmatpush.msra.mxu0 0.0
    %391 = vmatpush.msra.mxu0 0.0
    %392 = vmatpush.msra.mxu0 0.0
    %393 = vmatpush.msra.mxu0 0.0
    %394 = vmatpush.msra.mxu0 0.0
    %395 = vmatpush.msra.mxu0 0.0
    %396 = vmatpush.msra.mxu0 0.0
    %397 = vmatpush.msra.mxu0 %v377
    %398 = vmatmul.f32.gmra.mxu0 %v380
    %v399 = vpop.f32.mrf.mxu0
    %v400 = vadd.f32 0.0, %v399
    %401 = vdwg.mxu0
    %v402 = vld [vmem:[%s5 + $0x8] sm:$0xff]
    %v404 = vsel %vm145, %v374, 0
    %v407 = vsel %vm145, %v400, 0
    %409 = vmatpush.msra.mxu0 0.0
    %410 = vmatpush.msra.mxu0 0.0
    %411 = vmatpush.msra.mxu0 0.0
    %412 = vmatpush.msra.mxu0 0.0
    %413 = vmatpush.msra.mxu0 0.0
    %414 = vmatpush.msra.mxu0 0.0
    %415 = vmatpush.msra.mxu0 0.0
    %416 = vmatpush.msra.mxu0 0.0
    %417 = vmatpush.msra.mxu0 0.0
    %418 = vmatpush.msra.mxu0 0.0
    %419 = vmatpush.msra.mxu0 0.0
    %420 = vmatpush.msra.mxu0 0.0
    %421 = vmatpush.msra.mxu0 0.0
    %422 = vmatpush.msra.mxu0 0.0
    %423 = vmatpush.msra.mxu0 0.0
    %424 = vmatpush.msra.mxu0 %v402
    %425 = vmatmul.f32.gmra.mxu0 %v404
    %v426 = vpop.f32.mrf.mxu0
    %v427 = vadd.f32 0.0, %v426
    %428 = vmatmul.f32.gmra.mxu0 %v407
    %v429 = vpop.f32.mrf.mxu0
    %v430 = vadd.f32 0.0, %v429
    %431 = vdwg.mxu0
    %v433 = vsel %vm145, %v243, 0
    %v436 = vsel %vm145, %v269, 0
    %438 = vmatpush.msra.mxu0 0.0
    %439 = vmatpush.msra.mxu0 0.0
    %440 = vmatpush.msra.mxu0 0.0
    %441 = vmatpush.msra.mxu0 0.0
    %442 = vmatpush.msra.mxu0 0.0
    %443 = vmatpush.msra.mxu0 0.0
    %444 = vmatpush.msra.mxu0 0.0
    %445 = vmatpush.msra.mxu0 0.0
    %446 = vmatpush.msra.mxu0 0.0
    %447 = vmatpush.msra.mxu0 0.0
    %448 = vmatpush.msra.mxu0 0.0
    %449 = vmatpush.msra.mxu0 0.0
    %450 = vmatpush.msra.mxu0 0.0
    %451 = vmatpush.msra.mxu0 0.0
    %452 = vmatpush.msra.mxu0 0.0
    %453 = vmatpush.msra.mxu0 %v271
    %454 = vmatmul.f32.gmra.mxu0 %v433
    %v455 = vpop.f32.mrf.mxu0
    %v456 = vadd.f32 %v427, %v455
    %457 = vmatmul.f32.gmra.mxu0 %v436
    %v458 = vpop.f32.mrf.mxu0
    %v459 = vadd.f32 %v430, %v458
    %460 = vdwg.mxu0
    %461 = vrot.lane.b32.xlu0 %v137, 112
    %v462 = vpop.permute.xlu0 %461
    %463 = vrot.lane.b32.xlu0 %v137, 80
    %v464 = vpop.permute.xlu0 %463
    %v465 = vsel %vm145, %v462, 0
    %v467 = vsel %vm145, %v464, 0
    %469 = vmatpush.xpose.msra.mxu0 0.0
    %470 = vmatpush.xpose.msra.mxu0 0.0
    %471 = vmatpush.xpose.msra.mxu0 0.0
    %472 = vmatpush.xpose.msra.mxu0 0.0
    %473 = vmatpush.xpose.msra.mxu0 0.0
    %474 = vmatpush.xpose.msra.mxu0 0.0
    %475 = vmatpush.xpose.msra.mxu0 0.0
    %476 = vmatpush.xpose.msra.mxu0 0.0
    %477 = vmatpush.xpose.msra.mxu0 0.0
    %478 = vmatpush.xpose.msra.mxu0 0.0
    %479 = vmatpush.xpose.msra.mxu0 0.0
    %480 = vmatpush.xpose.msra.mxu0 0.0
    %481 = vmatpush.xpose.msra.mxu0 0.0
    %482 = vmatpush.xpose.msra.mxu0 0.0
    %483 = vmatpush.xpose.msra.mxu0 0.0
    %484 = vmatpush.xpose.msra.mxu0 %v467
    %485 = vmatmul.f32.gmra.mxu0 %v465
    %v486 = vpop.f32.mrf.mxu0
    %v487 = vadd.f32 %v47, %v486
    %488 = vdwg.mxu0
    %489 = vrot.lane.b32.xlu0 %v140, 112
    %v490 = vpop.permute.xlu0 %489
    %491 = vrot.lane.b32.xlu0 %v140, 80
    %v492 = vpop.permute.xlu0 %491
    %v493 = vsel %vm145, %v490, 0
    %v495 = vsel %vm145, %v492, 0
    %497 = vmatpush.xpose.msra.mxu0 0.0
    %498 = vmatpush.xpose.msra.mxu0 0.0
    %499 = vmatpush.xpose.msra.mxu0 0.0
    %500 = vmatpush.xpose.msra.mxu0 0.0
    %501 = vmatpush.xpose.msra.mxu0 0.0
    %502 = vmatpush.xpose.msra.mxu0 0.0
    %503 = vmatpush.xpose.msra.mxu0 0.0
    %504 = vmatpush.xpose.msra.mxu0 0.0
    %505 = vmatpush.xpose.msra.mxu0 0.0
    %506 = vmatpush.xpose.msra.mxu0 0.0
    %507 = vmatpush.xpose.msra.mxu0 0.0
    %508 = vmatpush.xpose.msra.mxu0 0.0
    %509 = vmatpush.xpose.msra.mxu0 0.0
    %510 = vmatpush.xpose.msra.mxu0 0.0
    %511 = vmatpush.xpose.msra.mxu0 0.0
    %512 = vmatpush.xpose.msra.mxu0 %v495
    %513 = vmatmul.f32.gmra.mxu0 %v493
    %v514 = vpop.f32.mrf.mxu0
    %v515 = vadd.f32 %v48, %v514
    %516 = vdwg.mxu0
    %v517 = vsel %vm145, %v487, -inf
    %518 = vmax.xlane.f32.xlu0 %v517
    %v519 = vpop.xlane.xlu0 %518
    %v520 = vsel %vm145, %v515, -inf
    %521 = vmax.xlane.f32.xlu0 %v520
    %v522 = vpop.xlane.xlu0 %521
    %v523 = vsub.f32 %v487, %v519
    %v524 = vsub.f32 %v515, %v522
    %v525 = vmul.f32 %v523, 1.442695
    %v526 = vpow.pop %v525
    %v527 = vmul.f32 %v524, 1.442695
    %v528 = vpow.pop %v527
    %v529 = vsel %vm145, %v526, 0.0
    %530 = vadd.xlane.f32.xlu0 %v529
    %v531 = vpop.xlane.xlu0 %530
    %v532 = vsel %vm145, %v528, 0.0
    %533 = vadd.xlane.f32.xlu0 %v532
    %v534 = vpop.xlane.xlu0 %533
    %v535 = vrcp.pop %v531
    %v536 = vrcp.pop %v534
    %v537 = vmul.f32 %v526, %v535
    %v538 = vmul.f32 %v528, %v536
    %539 = vrot.lane.b32.xlu0 %v137, 48
    %v540 = vpop.permute.xlu0 %539
    %v543 = vsel %vm145, %v537, 0
    %545 = vmatpush.msra.mxu0 0.0
    %546 = vmatpush.msra.mxu0 0.0
    %547 = vmatpush.msra.mxu0 0.0
    %548 = vmatpush.msra.mxu0 0.0
    %549 = vmatpush.msra.mxu0 0.0
    %550 = vmatpush.msra.mxu0 0.0
    %551 = vmatpush.msra.mxu0 0.0
    %552 = vmatpush.msra.mxu0 0.0
    %553 = vmatpush.msra.mxu0 0.0
    %554 = vmatpush.msra.mxu0 0.0
    %555 = vmatpush.msra.mxu0 0.0
    %556 = vmatpush.msra.mxu0 0.0
    %557 = vmatpush.msra.mxu0 0.0
    %558 = vmatpush.msra.mxu0 0.0
    %559 = vmatpush.msra.mxu0 0.0
    %560 = vmatpush.msra.mxu0 %v540
    %561 = vmatmul.f32.gmra.mxu0 %v543
    %v562 = vpop.f32.mrf.mxu0
    %v563 = vadd.f32 0.0, %v562
    %564 = vdwg.mxu0
    %565 = vrot.lane.b32.xlu0 %v140, 48
    %v566 = vpop.permute.xlu0 %565
    %v569 = vsel %vm145, %v538, 0
    %571 = vmatpush.msra.mxu0 0.0
    %572 = vmatpush.msra.mxu0 0.0
    %573 = vmatpush.msra.mxu0 0.0
    %574 = vmatpush.msra.mxu0 0.0
    %575 = vmatpush.msra.mxu0 0.0
    %576 = vmatpush.msra.mxu0 0.0
    %577 = vmatpush.msra.mxu0 0.0
    %578 = vmatpush.msra.mxu0 0.0
    %579 = vmatpush.msra.mxu0 0.0
    %580 = vmatpush.msra.mxu0 0.0
    %581 = vmatpush.msra.mxu0 0.0
    %582 = vmatpush.msra.mxu0 0.0
    %583 = vmatpush.msra.mxu0 0.0
    %584 = vmatpush.msra.mxu0 0.0
    %585 = vmatpush.msra.mxu0 0.0
    %586 = vmatpush.msra.mxu0 %v566
    %587 = vmatmul.f32.gmra.mxu0 %v569
    %v588 = vpop.f32.mrf.mxu0
    %v589 = vadd.f32 0.0, %v588
    %590 = vdwg.mxu0
    %v591 = vld [vmem:[%s5 + $0x10] sm:$0xff]
    %v593 = vsel %vm145, %v563, 0
    %v596 = vsel %vm145, %v589, 0
    %598 = vmatpush.msra.mxu0 0.0
    %599 = vmatpush.msra.mxu0 0.0
    %600 = vmatpush.msra.mxu0 0.0
    %601 = vmatpush.msra.mxu0 0.0
    %602 = vmatpush.msra.mxu0 0.0
    %603 = vmatpush.msra.mxu0 0.0
    %604 = vmatpush.msra.mxu0 0.0
    %605 = vmatpush.msra.mxu0 0.0
    %606 = vmatpush.msra.mxu0 0.0
    %607 = vmatpush.msra.mxu0 0.0
    %608 = vmatpush.msra.mxu0 0.0
    %609 = vmatpush.msra.mxu0 0.0
    %610 = vmatpush.msra.mxu0 0.0
    %611 = vmatpush.msra.mxu0 0.0
    %612 = vmatpush.msra.mxu0 0.0
    %613 = vmatpush.msra.mxu0 %v591
    %614 = vmatmul.f32.gmra.mxu0 %v593
    %v615 = vpop.f32.mrf.mxu0
    %v616 = vadd.f32 0.0, %v615
    %617 = vmatmul.f32.gmra.mxu0 %v596
    %v618 = vpop.f32.mrf.mxu0
    %v619 = vadd.f32 0.0, %v618
    %620 = vdwg.mxu0
    %v621 = vadd.f32 %v456, %v616
    %v622 = vadd.f32 %v459, %v619
    %623 = vrot.lane.b32.xlu0 %v137, 104
    %v624 = vpop.permute.xlu0 %623
    %625 = vrot.lane.b32.xlu0 %v137, 72
    %v626 = vpop.permute.xlu0 %625
    %v627 = vsel %vm145, %v624, 0
    %v629 = vsel %vm145, %v626, 0
    %631 = vmatpush.xpose.msra.mxu0 0.0
    %632 = vmatpush.xpose.msra.mxu0 0.0
    %633 = vmatpush.xpose.msra.mxu0 0.0
    %634 = vmatpush.xpose.msra.mxu0 0.0
    %635 = vmatpush.xpose.msra.mxu0 0.0
    %636 = vmatpush.xpose.msra.mxu0 0.0
    %637 = vmatpush.xpose.msra.mxu0 0.0
    %638 = vmatpush.xpose.msra.mxu0 0.0
    %639 = vmatpush.xpose.msra.mxu0 0.0
    %640 = vmatpush.xpose.msra.mxu0 0.0
    %641 = vmatpush.xpose.msra.mxu0 0.0
    %642 = vmatpush.xpose.msra.mxu0 0.0
    %643 = vmatpush.xpose.msra.mxu0 0.0
    %644 = vmatpush.xpose.msra.mxu0 0.0
    %645 = vmatpush.xpose.msra.mxu0 0.0
    %646 = vmatpush.xpose.msra.mxu0 %v629
    %647 = vmatmul.f32.gmra.mxu0 %v627
    %v648 = vpop.f32.mrf.mxu0
    %v649 = vadd.f32 %v47, %v648
    %650 = vdwg.mxu0
    %651 = vrot.lane.b32.xlu0 %v140, 104
    %v652 = vpop.permute.xlu0 %651
    %653 = vrot.lane.b32.xlu0 %v140, 72
    %v654 = vpop.permute.xlu0 %653
    %v655 = vsel %vm145, %v652, 0
    %v657 = vsel %vm145, %v654, 0
    %659 = vmatpush.xpose.msra.mxu0 0.0
    %660 = vmatpush.xpose.msra.mxu0 0.0
    %661 = vmatpush.xpose.msra.mxu0 0.0
    %662 = vmatpush.xpose.msra.mxu0 0.0
    %663 = vmatpush.xpose.msra.mxu0 0.0
    %664 = vmatpush.xpose.msra.mxu0 0.0
    %665 = vmatpush.xpose.msra.mxu0 0.0
    %666 = vmatpush.xpose.msra.mxu0 0.0
    %667 = vmatpush.xpose.msra.mxu0 0.0
    %668 = vmatpush.xpose.msra.mxu0 0.0
    %669 = vmatpush.xpose.msra.mxu0 0.0
    %670 = vmatpush.xpose.msra.mxu0 0.0
    %671 = vmatpush.xpose.msra.mxu0 0.0
    %672 = vmatpush.xpose.msra.mxu0 0.0
    %673 = vmatpush.xpose.msra.mxu0 0.0
    %674 = vmatpush.xpose.msra.mxu0 %v657
    %675 = vmatmul.f32.gmra.mxu0 %v655
    %v676 = vpop.f32.mrf.mxu0
    %v677 = vadd.f32 %v48, %v676
    %678 = vdwg.mxu0
    %v679 = vsel %vm145, %v649, -inf
    %680 = vmax.xlane.f32.xlu0 %v679
    %v681 = vpop.xlane.xlu0 %680
    %v682 = vsel %vm145, %v677, -inf
    %683 = vmax.xlane.f32.xlu0 %v682
    %v684 = vpop.xlane.xlu0 %683
    %v685 = vsub.f32 %v649, %v681
    %v686 = vsub.f32 %v677, %v684
    %v687 = vmul.f32 %v685, 1.442695
    %v688 = vpow.pop %v687
    %v689 = vmul.f32 %v686, 1.442695
    %v690 = vpow.pop %v689
    %v691 = vsel %vm145, %v688, 0.0
    %692 = vadd.xlane.f32.xlu0 %v691
    %v693 = vpop.xlane.xlu0 %692
    %v694 = vsel %vm145, %v690, 0.0
    %695 = vadd.xlane.f32.xlu0 %v694
    %v696 = vpop.xlane.xlu0 %695
    %v697 = vrcp.pop %v693
    %v698 = vrcp.pop %v696
    %v699 = vmul.f32 %v688, %v697
    %v700 = vmul.f32 %v690, %v698
    %701 = vrot.lane.b32.xlu0 %v137, 40
    %v702 = vpop.permute.xlu0 %701
    %v705 = vsel %vm145, %v699, 0
    %707 = vmatpush.msra.mxu0 0.0
    %708 = vmatpush.msra.mxu0 0.0
    %709 = vmatpush.msra.mxu0 0.0
    %710 = vmatpush.msra.mxu0 0.0
    %711 = vmatpush.msra.mxu0 0.0
    %712 = vmatpush.msra.mxu0 0.0
    %713 = vmatpush.msra.mxu0 0.0
    %714 = vmatpush.msra.mxu0 0.0
    %715 = vmatpush.msra.mxu0 0.0
    %716 = vmatpush.msra.mxu0 0.0
    %717 = vmatpush.msra.mxu0 0.0
    %718 = vmatpush.msra.mxu0 0.0
    %719 = vmatpush.msra.mxu0 0.0
    %720 = vmatpush.msra.mxu0 0.0
    %721 = vmatpush.msra.mxu0 0.0
    %722 = vmatpush.msra.mxu0 %v702
    %723 = vmatmul.f32.gmra.mxu0 %v705
    %v724 = vpop.f32.mrf.mxu0
    %v725 = vadd.f32 0.0, %v724
    %726 = vdwg.mxu0
    %727 = vrot.lane.b32.xlu0 %v140, 40
    %v728 = vpop.permute.xlu0 %727
    %v731 = vsel %vm145, %v700, 0
    %733 = vmatpush.msra.mxu0 0.0
    %734 = vmatpush.msra.mxu0 0.0
    %735 = vmatpush.msra.mxu0 0.0
    %736 = vmatpush.msra.mxu0 0.0
    %737 = vmatpush.msra.mxu0 0.0
    %738 = vmatpush.msra.mxu0 0.0
    %739 = vmatpush.msra.mxu0 0.0
    %740 = vmatpush.msra.mxu0 0.0
    %741 = vmatpush.msra.mxu0 0.0
    %742 = vmatpush.msra.mxu0 0.0
    %743 = vmatpush.msra.mxu0 0.0
    %744 = vmatpush.msra.mxu0 0.0
    %745 = vmatpush.msra.mxu0 0.0
    %746 = vmatpush.msra.mxu0 0.0
    %747 = vmatpush.msra.mxu0 0.0
    %748 = vmatpush.msra.mxu0 %v728
    %749 = vmatmul.f32.gmra.mxu0 %v731
    %v750 = vpop.f32.mrf.mxu0
    %v751 = vadd.f32 0.0, %v750
    %752 = vdwg.mxu0
    %v753 = vld [vmem:[%s5 + $0x18] sm:$0xff]
    %v755 = vsel %vm145, %v725, 0
    %v758 = vsel %vm145, %v751, 0
    %760 = vmatpush.msra.mxu0 0.0
    %761 = vmatpush.msra.mxu0 0.0
    %762 = vmatpush.msra.mxu0 0.0
    %763 = vmatpush.msra.mxu0 0.0
    %764 = vmatpush.msra.mxu0 0.0
    %765 = vmatpush.msra.mxu0 0.0
    %766 = vmatpush.msra.mxu0 0.0
    %767 = vmatpush.msra.mxu0 0.0
    %768 = vmatpush.msra.mxu0 0.0
    %769 = vmatpush.msra.mxu0 0.0
    %770 = vmatpush.msra.mxu0 0.0
    %771 = vmatpush.msra.mxu0 0.0
    %772 = vmatpush.msra.mxu0 0.0
    %773 = vmatpush.msra.mxu0 0.0
    %774 = vmatpush.msra.mxu0 0.0
    %775 = vmatpush.msra.mxu0 %v753
    %776 = vmatmul.f32.gmra.mxu0 %v755
    %v777 = vpop.f32.mrf.mxu0
    %v778 = vadd.f32 0.0, %v777
    %779 = vmatmul.f32.gmra.mxu0 %v758
    %v780 = vpop.f32.mrf.mxu0
    %v781 = vadd.f32 0.0, %v780
    %782 = vdwg.mxu0
    %v783 = vadd.f32 %v621, %v778
    %v784 = vadd.f32 %v622, %v781
    %v785 = vld [vmem:[%s5 + $0x20] sm:$0x1]
    %v786 = vperm.slane %v785, 0
    %v787 = vadd.f32 %v783, %v786
    %v788 = vadd.f32 %v784, %v786
    %v789 = vadd.f32 %v787, %v39
    %v790 = vadd.f32 %v788, %v40
    %v791 = vsel %vm55, %v789, 0.0
    %792 = vadd.xlane.f32.xlu0 %v791
    %v793 = vpop.xlane.xlu0 %792
    %v794 = vsel %vm55, %v790, 0.0
    %795 = vadd.xlane.f32.xlu0 %v794
    %v796 = vpop.xlane.xlu0 %795
    %v797 = vmul.f32 %v793, %v68
    %v798 = vmul.f32 %v796, %v68
    %v799 = vsub.f32 %v789, %v797
    %v800 = vsub.f32 %v790, %v798
    %v801 = vmul.f32 %v799, %v799
    %v802 = vmul.f32 %v800, %v800
    %v803 = vsel %vm55, %v801, 0.0
    %804 = vadd.xlane.f32.xlu0 %v803
    %v805 = vpop.xlane.xlu0 %804
    %v806 = vsel %vm55, %v802, 0.0
    %807 = vadd.xlane.f32.xlu0 %v806
    %v808 = vpop.xlane.xlu0 %807
    %v809 = vmul.f32 %v805, %v68
    %v810 = vmul.f32 %v808, %v68
    %v811 = vadd.f32 %v809, 1e-05
    %v812 = vadd.f32 %v810, 1e-05
    %v813 = vrsqrt.pop %v811
    %v814 = vmul.f32 %v813, %v811
    %v815 = vmul.f32 %v814, %v813
    %v816 = vmul.f32 0.5, %v815
    %v817 = vsub.f32 1.5, %v816
    %v818 = vmul.f32 %v813, %v817
    %vm819 = vweird.f32 %v811
    %vm820 = vweird.f32 %v813
    %vm821 = vmor %vm819, %vm820
    %v822 = vsel %vm821, %v813, %v818
    %v823 = vrsqrt.pop %v812
    %v824 = vmul.f32 %v823, %v812
    %v825 = vmul.f32 %v824, %v823
    %v826 = vmul.f32 0.5, %v825
    %v827 = vsub.f32 1.5, %v826
    %v828 = vmul.f32 %v823, %v827
    %vm829 = vweird.f32 %v812
    %vm830 = vweird.f32 %v823
    %vm831 = vmor %vm829, %vm830
    %v832 = vsel %vm831, %v823, %v828
    %v833 = vmul.f32 %v799, %v822
    %v834 = vmul.f32 %v800, %v832
    %v835 = vld [vmem:[%s6] sm:$0xff]
    %v836 = vld [vmem:[%s6 + $0x8] sm:$0xff]
    %v837 = vld [vmem:[%s6 + $0x10] sm:$0xff]
    %v838 = vld [vmem:[%s6 + $0x18] sm:$0xff]
    %v839 = vld [vmem:[%s6 + $0x20] sm:$0x1]
    %v840 = vperm.slane %v839, 0
    %v842 = vsel %vm55, %v833, 0
    %v845 = vsel %vm55, %v834, 0
    %847 = vmatpush.msra.mxu0 0.0
    %848 = vmatpush.msra.mxu0 0.0
    %849 = vmatpush.msra.mxu0 0.0
    %850 = vmatpush.msra.mxu0 0.0
    %851 = vmatpush.msra.mxu0 0.0
    %852 = vmatpush.msra.mxu0 0.0
    %853 = vmatpush.msra.mxu0 0.0
    %854 = vmatpush.msra.mxu0 0.0
    %855 = vmatpush.msra.mxu0 0.0
    %856 = vmatpush.msra.mxu0 0.0
    %857 = vmatpush.msra.mxu0 0.0
    %858 = vmatpush.msra.mxu0 0.0
    %859 = vmatpush.msra.mxu0 %v838
    %860 = vmatpush.msra.mxu0 %v837
    %861 = vmatpush.msra.mxu0 %v836
    %862 = vmatpush.msra.mxu0 %v835
    %863 = vmatmul.f32.gmra.mxu0 %v842
    %v864 = vpop.f32.mrf.mxu0
    %v865 = vadd.f32 %v840, %v864
    %866 = vmatmul.f32.gmra.mxu0 %v845
    %v867 = vpop.f32.mrf.mxu0
    %v868 = vadd.f32 %v840, %v867
    %869 = vdwg.mxu0
    %v870 = vld [vmem:[%s7] sm:$0xff]
    %v871 = vld [vmem:[%s7 + $0x8] sm:$0xff]
    %v872 = vld [vmem:[%s7 + $0x10] sm:$0xff]
    %v873 = vld [vmem:[%s7 + $0x18] sm:$0xff]
    %v874 = vld [vmem:[%s7 + $0x20] sm:$0x1]
    %v875 = vperm.slane %v874, 0
    %v877 = vsel %vm55, %v41, 0
    %v880 = vsel %vm55, %v42, 0
    %882 = vmatpush.msra.mxu0 0.0
    %883 = vmatpush.msra.mxu0 0.0
    %884 = vmatpush.msra.mxu0 0.0
    %885 = vmatpush.msra.mxu0 0.0
    %886 = vmatpush.msra.mxu0 0.0
    %887 = vmatpush.msra.mxu0 0.0
    %888 = vmatpush.msra.mxu0 0.0
    %889 = vmatpush.msra.mxu0 0.0
    %890 = vmatpush.msra.mxu0 0.0
    %891 = vmatpush.msra.mxu0 0.0
    %892 = vmatpush.msra.mxu0 0.0
    %893 = vmatpush.msra.mxu0 0.0
    %894 = vmatpush.msra.mxu0 %v873
    %895 = vmatpush.msra.mxu0 %v872
    %896 = vmatpush.msra.mxu0 %v871
    %897 = vmatpush.msra.mxu0 %v870
    %898 = vmatmul.f32.gmra.mxu0 %v877
    %v899 = vpop.f32.mrf.mxu0
    %v900 = vadd.f32 %v875, %v899
    %901 = vmatmul.f32.gmra.mxu0 %v880
    %v902 = vpop.f32.mrf.mxu0
    %v903 = vadd.f32 %v875, %v902
    %904 = vdwg.mxu0
    %v906 = vsel %vm145, %v865, 0
    %v909 = vsel %vm145, %v900, 0
    %911 = vmatpush.xpose.msra.mxu0 0.0
    %912 = vmatpush.xpose.msra.mxu0 0.0
    %913 = vmatpush.xpose.msra.mxu0 0.0
    %914 = vmatpush.xpose.msra.mxu0 0.0
    %915 = vmatpush.xpose.msra.mxu0 0.0
    %916 = vmatpush.xpose.msra.mxu0 0.0
    %917 = vmatpush.xpose.msra.mxu0 0.0
    %918 = vmatpush.xpose.msra.mxu0 0.0
    %919 = vmatpush.xpose.msra.mxu0 0.0
    %920 = vmatpush.xpose.msra.mxu0 0.0
    %921 = vmatpush.xpose.msra.mxu0 0.0
    %922 = vmatpush.xpose.msra.mxu0 0.0
    %923 = vmatpush.xpose.msra.mxu0 0.0
    %924 = vmatpush.xpose.msra.mxu0 0.0
    %925 = vmatpush.xpose.msra.mxu0 0.0
    %926 = vmatpush.xpose.msra.mxu0 %v909
    %927 = vmatmul.f32.gmra.mxu0 %v906
    %v928 = vpop.f32.mrf.mxu0
    %v929 = vadd.f32 %v53, %v928
    %930 = vdwg.mxu0
    %v932 = vsel %vm145, %v868, 0
    %v935 = vsel %vm145, %v903, 0
    %937 = vmatpush.xpose.msra.mxu0 0.0
    %938 = vmatpush.xpose.msra.mxu0 0.0
    %939 = vmatpush.xpose.msra.mxu0 0.0
    %940 = vmatpush.xpose.msra.mxu0 0.0
    %941 = vmatpush.xpose.msra.mxu0 0.0
    %942 = vmatpush.xpose.msra.mxu0 0.0
    %943 = vmatpush.xpose.msra.mxu0 0.0
    %944 = vmatpush.xpose.msra.mxu0 0.0
    %945 = vmatpush.xpose.msra.mxu0 0.0
    %946 = vmatpush.xpose.msra.mxu0 0.0
    %947 = vmatpush.xpose.msra.mxu0 0.0
    %948 = vmatpush.xpose.msra.mxu0 0.0
    %949 = vmatpush.xpose.msra.mxu0 0.0
    %950 = vmatpush.xpose.msra.mxu0 0.0
    %951 = vmatpush.xpose.msra.mxu0 0.0
    %952 = vmatpush.xpose.msra.mxu0 %v935
    %953 = vmatmul.f32.gmra.mxu0 %v932
    %v954 = vpop.f32.mrf.mxu0
    %v955 = vadd.f32 %v54, %v954
    %956 = vdwg.mxu0
    %v957 = vsel %vm145, %v929, -inf
    %958 = vmax.xlane.f32.xlu0 %v957
    %v959 = vpop.xlane.xlu0 %958
    %v960 = vsel %vm145, %v955, -inf
    %961 = vmax.xlane.f32.xlu0 %v960
    %v962 = vpop.xlane.xlu0 %961
    %v963 = vsub.f32 %v929, %v959
    %v964 = vsub.f32 %v955, %v962
    %v965 = vmul.f32 %v963, 1.442695
    %v966 = vpow.pop %v965
    %v967 = vmul.f32 %v964, 1.442695
    %v968 = vpow.pop %v967
    %v969 = vsel %vm145, %v966, 0.0
    %970 = vadd.xlane.f32.xlu0 %v969
    %v971 = vpop.xlane.xlu0 %970
    %v972 = vsel %vm145, %v968, 0.0
    %973 = vadd.xlane.f32.xlu0 %v972
    %v974 = vpop.xlane.xlu0 %973
    %v975 = vrcp.pop %v971
    %v976 = vrcp.pop %v974
    %v977 = vmul.f32 %v966, %v975
    %v978 = vmul.f32 %v968, %v976
    %979 = vrot.lane.b32.xlu0 %v900, 96
    %v980 = vpop.permute.xlu0 %979
    %v983 = vsel %vm145, %v977, 0
    %985 = vmatpush.msra.mxu0 0.0
    %986 = vmatpush.msra.mxu0 0.0
    %987 = vmatpush.msra.mxu0 0.0
    %988 = vmatpush.msra.mxu0 0.0
    %989 = vmatpush.msra.mxu0 0.0
    %990 = vmatpush.msra.mxu0 0.0
    %991 = vmatpush.msra.mxu0 0.0
    %992 = vmatpush.msra.mxu0 0.0
    %993 = vmatpush.msra.mxu0 0.0
    %994 = vmatpush.msra.mxu0 0.0
    %995 = vmatpush.msra.mxu0 0.0
    %996 = vmatpush.msra.mxu0 0.0
    %997 = vmatpush.msra.mxu0 0.0
    %998 = vmatpush.msra.mxu0 0.0
    %999 = vmatpush.msra.mxu0 0.0
    %1000 = vmatpush.msra.mxu0 %v980
    %1001 = vmatmul.f32.gmra.mxu0 %v983
    %v1002 = vpop.f32.mrf.mxu0
    %v1003 = vadd.f32 0.0, %v1002
    %1004 = vdwg.mxu0
    %1005 = vrot.lane.b32.xlu0 %v903, 96
    %v1006 = vpop.permute.xlu0 %1005
    %v1009 = vsel %vm145, %v978, 0
    %1011 = vmatpush.msra.mxu0 0.0
    %1012 = vmatpush.msra.mxu0 0.0
    %1013 = vmatpush.msra.mxu0 0.0
    %1014 = vmatpush.msra.mxu0 0.0
    %1015 = vmatpush.msra.mxu0 0.0
    %1016 = vmatpush.msra.mxu0 0.0
    %1017 = vmatpush.msra.mxu0 0.0
    %1018 = vmatpush.msra.mxu0 0.0
    %1019 = vmatpush.msra.mxu0 0.0
    %1020 = vmatpush.msra.mxu0 0.0
    %1021 = vmatpush.msra.mxu0 0.0
    %1022 = vmatpush.msra.mxu0 0.0
    %1023 = vmatpush.msra.mxu0 0.0
    %1024 = vmatpush.msra.mxu0 0.0
    %1025 = vmatpush.msra.mxu0 0.0
    %1026 = vmatpush.msra.mxu0 %v1006
    %1027 = vmatmul.f32.gmra.mxu0 %v1009
    %v1028 = vpop.f32.mrf.mxu0
    %v1029 = vadd.f32 0.0, %v1028
    %1030 = vdwg.mxu0
    %v1031 = vld [vmem:[%s8] sm:$0xff]
    %1032 = vrot.lane.b32.xlu0 %v865, 120
    %v1033 = vpop.permute.xlu0 %1032
    %1034 = vrot.lane.b32.xlu0 %v900, 120
    %v1035 = vpop.permute.xlu0 %1034
    %v1036 = vsel %vm145, %v1033, 0
    %v1038 = vsel %vm145, %v1035, 0
    %1040 = vmatpush.xpose.msra.mxu0 0.0
    %1041 = vmatpush.xpose.msra.mxu0 0.0
    %1042 = vmatpush.xpose.msra.mxu0 0.0
    %1043 = vmatpush.xpose.msra.mxu0 0.0
    %1044 = vmatpush.xpose.msra.mxu0 0.0
    %1045 = vmatpush.xpose.msra.mxu0 0.0
    %1046 = vmatpush.xpose.msra.mxu0 0.0
    %1047 = vmatpush.xpose.msra.mxu0 0.0
    %1048 = vmatpush.xpose.msra.mxu0 0.0
    %1049 = vmatpush.xpose.msra.mxu0 0.0
    %1050 = vmatpush.xpose.msra.mxu0 0.0
    %1051 = vmatpush.xpose.msra.mxu0 0.0
    %1052 = vmatpush.xpose.msra.mxu0 0.0
    %1053 = vmatpush.xpose.msra.mxu0 0.0
    %1054 = vmatpush.xpose.msra.mxu0 0.0
    %1055 = vmatpush.xpose.msra.mxu0 %v1038
    %1056 = vmatmul.f32.gmra.mxu0 %v1036
    %v1057 = vpop.f32.mrf.mxu0
    %v1058 = vadd.f32 %v53, %v1057
    %1059 = vdwg.mxu0
    %1060 = vrot.lane.b32.xlu0 %v868, 120
    %v1061 = vpop.permute.xlu0 %1060
    %1062 = vrot.lane.b32.xlu0 %v903, 120
    %v1063 = vpop.permute.xlu0 %1062
    %v1064 = vsel %vm145, %v1061, 0
    %v1066 = vsel %vm145, %v1063, 0
    %1068 = vmatpush.xpose.msra.mxu0 0.0
    %1069 = vmatpush.xpose.msra.mxu0 0.0
    %1070 = vmatpush.xpose.msra.mxu0 0.0
    %1071 = vmatpush.xpose.msra.mxu0 0.0
    %1072 = vmatpush.xpose.msra.mxu0 0.0
    %1073 = vmatpush.xpose.msra.mxu0 0.0
    %1074 = vmatpush.xpose.msra.mxu0 0.0
    %1075 = vmatpush.xpose.msra.mxu0 0.0
    %1076 = vmatpush.xpose.msra.mxu0 0.0
    %1077 = vmatpush.xpose.msra.mxu0 0.0
    %1078 = vmatpush.xpose.msra.mxu0 0.0
    %1079 = vmatpush.xpose.msra.mxu0 0.0
    %1080 = vmatpush.xpose.msra.mxu0 0.0
    %1081 = vmatpush.xpose.msra.mxu0 0.0
    %1082 = vmatpush.xpose.msra.mxu0 0.0
    %1083 = vmatpush.xpose.msra.mxu0 %v1066
    %1084 = vmatmul.f32.gmra.mxu0 %v1064
    %v1085 = vpop.f32.mrf.mxu0
    %v1086 = vadd.f32 %v54, %v1085
    %1087 = vdwg.mxu0
    %v1088 = vsel %vm145, %v1058, -inf
    %1089 = vmax.xlane.f32.xlu0 %v1088
    %v1090 = vpop.xlane.xlu0 %1089
    %v1091 = vsel %vm145, %v1086, -inf
    %1092 = vmax.xlane.f32.xlu0 %v1091
    %v1093 = vpop.xlane.xlu0 %1092
    %v1094 = vsub.f32 %v1058, %v1090
    %v1095 = vsub.f32 %v1086, %v1093
    %v1096 = vmul.f32 %v1094, 1.442695
    %v1097 = vpow.pop %v1096
    %v1098 = vmul.f32 %v1095, 1.442695
    %v1099 = vpow.pop %v1098
    %v1100 = vsel %vm145, %v1097, 0.0
    %1101 = vadd.xlane.f32.xlu0 %v1100
    %v1102 = vpop.xlane.xlu0 %1101
    %v1103 = vsel %vm145, %v1099, 0.0
    %1104 = vadd.xlane.f32.xlu0 %v1103
    %v1105 = vpop.xlane.xlu0 %1104
    %v1106 = vrcp.pop %v1102
    %v1107 = vrcp.pop %v1105
    %v1108 = vmul.f32 %v1097, %v1106
    %v1109 = vmul.f32 %v1099, %v1107
    %1110 = vrot.lane.b32.xlu0 %v900, 88
    %v1111 = vpop.permute.xlu0 %1110
    %v1114 = vsel %vm145, %v1108, 0
    %1116 = vmatpush.msra.mxu0 0.0
    %1117 = vmatpush.msra.mxu0 0.0
    %1118 = vmatpush.msra.mxu0 0.0
    %1119 = vmatpush.msra.mxu0 0.0
    %1120 = vmatpush.msra.mxu0 0.0
    %1121 = vmatpush.msra.mxu0 0.0
    %1122 = vmatpush.msra.mxu0 0.0
    %1123 = vmatpush.msra.mxu0 0.0
    %1124 = vmatpush.msra.mxu0 0.0
    %1125 = vmatpush.msra.mxu0 0.0
    %1126 = vmatpush.msra.mxu0 0.0
    %1127 = vmatpush.msra.mxu0 0.0
    %1128 = vmatpush.msra.mxu0 0.0
    %1129 = vmatpush.msra.mxu0 0.0
    %1130 = vmatpush.msra.mxu0 0.0
    %1131 = vmatpush.msra.mxu0 %v1111
    %1132 = vmatmul.f32.gmra.mxu0 %v1114
    %v1133 = vpop.f32.mrf.mxu0
    %v1134 = vadd.f32 0.0, %v1133
    %1135 = vdwg.mxu0
    %1136 = vrot.lane.b32.xlu0 %v903, 88
    %v1137 = vpop.permute.xlu0 %1136
    %v1140 = vsel %vm145, %v1109, 0
    %1142 = vmatpush.msra.mxu0 0.0
    %1143 = vmatpush.msra.mxu0 0.0
    %1144 = vmatpush.msra.mxu0 0.0
    %1145 = vmatpush.msra.mxu0 0.0
    %1146 = vmatpush.msra.mxu0 0.0
    %1147 = vmatpush.msra.mxu0 0.0
    %1148 = vmatpush.msra.mxu0 0.0
    %1149 = vmatpush.msra.mxu0 0.0
    %1150 = vmatpush.msra.mxu0 0.0
    %1151 = vmatpush.msra.mxu0 0.0
    %1152 = vmatpush.msra.mxu0 0.0
    %1153 = vmatpush.msra.mxu0 0.0
    %1154 = vmatpush.msra.mxu0 0.0
    %1155 = vmatpush.msra.mxu0 0.0
    %1156 = vmatpush.msra.mxu0 0.0
    %1157 = vmatpush.msra.mxu0 %v1137
    %1158 = vmatmul.f32.gmra.mxu0 %v1140
    %v1159 = vpop.f32.mrf.mxu0
    %v1160 = vadd.f32 0.0, %v1159
    %1161 = vdwg.mxu0
    %v1162 = vld [vmem:[%s8 + $0x8] sm:$0xff]
    %v1164 = vsel %vm145, %v1134, 0
    %v1167 = vsel %vm145, %v1160, 0
    %1169 = vmatpush.msra.mxu0 0.0
    %1170 = vmatpush.msra.mxu0 0.0
    %1171 = vmatpush.msra.mxu0 0.0
    %1172 = vmatpush.msra.mxu0 0.0
    %1173 = vmatpush.msra.mxu0 0.0
    %1174 = vmatpush.msra.mxu0 0.0
    %1175 = vmatpush.msra.mxu0 0.0
    %1176 = vmatpush.msra.mxu0 0.0
    %1177 = vmatpush.msra.mxu0 0.0
    %1178 = vmatpush.msra.mxu0 0.0
    %1179 = vmatpush.msra.mxu0 0.0
    %1180 = vmatpush.msra.mxu0 0.0
    %1181 = vmatpush.msra.mxu0 0.0
    %1182 = vmatpush.msra.mxu0 0.0
    %1183 = vmatpush.msra.mxu0 0.0
    %1184 = vmatpush.msra.mxu0 %v1162
    %1185 = vmatmul.f32.gmra.mxu0 %v1164
    %v1186 = vpop.f32.mrf.mxu0
    %v1187 = vadd.f32 0.0, %v1186
    %1188 = vmatmul.f32.gmra.mxu0 %v1167
    %v1189 = vpop.f32.mrf.mxu0
    %v1190 = vadd.f32 0.0, %v1189
    %1191 = vdwg.mxu0
    %v1193 = vsel %vm145, %v1003, 0
    %v1196 = vsel %vm145, %v1029, 0
    %1198 = vmatpush.msra.mxu0 0.0
    %1199 = vmatpush.msra.mxu0 0.0
    %1200 = vmatpush.msra.mxu0 0.0
    %1201 = vmatpush.msra.mxu0 0.0
    %1202 = vmatpush.msra.mxu0 0.0
    %1203 = vmatpush.msra.mxu0 0.0
    %1204 = vmatpush.msra.mxu0 0.0
    %1205 = vmatpush.msra.mxu0 0.0
    %1206 = vmatpush.msra.mxu0 0.0
    %1207 = vmatpush.msra.mxu0 0.0
    %1208 = vmatpush.msra.mxu0 0.0
    %1209 = vmatpush.msra.mxu0 0.0
    %1210 = vmatpush.msra.mxu0 0.0
    %1211 = vmatpush.msra.mxu0 0.0
    %1212 = vmatpush.msra.mxu0 0.0
    %1213 = vmatpush.msra.mxu0 %v1031
    %1214 = vmatmul.f32.gmra.mxu0 %v1193
    %v1215 = vpop.f32.mrf.mxu0
    %v1216 = vadd.f32 %v1187, %v1215
    %1217 = vmatmul.f32.gmra.mxu0 %v1196
    %v1218 = vpop.f32.mrf.mxu0
    %v1219 = vadd.f32 %v1190, %v1218
    %1220 = vdwg.mxu0
    %1221 = vrot.lane.b32.xlu0 %v865, 112
    %v1222 = vpop.permute.xlu0 %1221
    %1223 = vrot.lane.b32.xlu0 %v900, 112
    %v1224 = vpop.permute.xlu0 %1223
    %v1225 = vsel %vm145, %v1222, 0
    %v1227 = vsel %vm145, %v1224, 0
    %1229 = vmatpush.xpose.msra.mxu0 0.0
    %1230 = vmatpush.xpose.msra.mxu0 0.0
    %1231 = vmatpush.xpose.msra.mxu0 0.0
    %1232 = vmatpush.xpose.msra.mxu0 0.0
    %1233 = vmatpush.xpose.msra.mxu0 0.0
    %1234 = vmatpush.xpose.msra.mxu0 0.0
    %1235 = vmatpush.xpose.msra.mxu0 0.0
    %1236 = vmatpush.xpose.msra.mxu0 0.0
    %1237 = vmatpush.xpose.msra.mxu0 0.0
    %1238 = vmatpush.xpose.msra.mxu0 0.0
    %1239 = vmatpush.xpose.msra.mxu0 0.0
    %1240 = vmatpush.xpose.msra.mxu0 0.0
    %1241 = vmatpush.xpose.msra.mxu0 0.0
    %1242 = vmatpush.xpose.msra.mxu0 0.0
    %1243 = vmatpush.xpose.msra.mxu0 0.0
    %1244 = vmatpush.xpose.msra.mxu0 %v1227
    %1245 = vmatmul.f32.gmra.mxu0 %v1225
    %v1246 = vpop.f32.mrf.mxu0
    %v1247 = vadd.f32 %v53, %v1246
    %1248 = vdwg.mxu0
    %1249 = vrot.lane.b32.xlu0 %v868, 112
    %v1250 = vpop.permute.xlu0 %1249
    %1251 = vrot.lane.b32.xlu0 %v903, 112
    %v1252 = vpop.permute.xlu0 %1251
    %v1253 = vsel %vm145, %v1250, 0
    %v1255 = vsel %vm145, %v1252, 0
    %1257 = vmatpush.xpose.msra.mxu0 0.0
    %1258 = vmatpush.xpose.msra.mxu0 0.0
    %1259 = vmatpush.xpose.msra.mxu0 0.0
    %1260 = vmatpush.xpose.msra.mxu0 0.0
    %1261 = vmatpush.xpose.msra.mxu0 0.0
    %1262 = vmatpush.xpose.msra.mxu0 0.0
    %1263 = vmatpush.xpose.msra.mxu0 0.0
    %1264 = vmatpush.xpose.msra.mxu0 0.0
    %1265 = vmatpush.xpose.msra.mxu0 0.0
    %1266 = vmatpush.xpose.msra.mxu0 0.0
    %1267 = vmatpush.xpose.msra.mxu0 0.0
    %1268 = vmatpush.xpose.msra.mxu0 0.0
    %1269 = vmatpush.xpose.msra.mxu0 0.0
    %1270 = vmatpush.xpose.msra.mxu0 0.0
    %1271 = vmatpush.xpose.msra.mxu0 0.0
    %1272 = vmatpush.xpose.msra.mxu0 %v1255
    %1273 = vmatmul.f32.gmra.mxu0 %v1253
    %v1274 = vpop.f32.mrf.mxu0
    %v1275 = vadd.f32 %v54, %v1274
    %1276 = vdwg.mxu0
    %v1277 = vsel %vm145, %v1247, -inf
    %1278 = vmax.xlane.f32.xlu0 %v1277
    %v1279 = vpop.xlane.xlu0 %1278
    %v1280 = vsel %vm145, %v1275, -inf
    %1281 = vmax.xlane.f32.xlu0 %v1280
    %v1282 = vpop.xlane.xlu0 %1281
    %v1283 = vsub.f32 %v1247, %v1279
    %v1284 = vsub.f32 %v1275, %v1282
    %v1285 = vmul.f32 %v1283, 1.442695
    %v1286 = vpow.pop %v1285
    %v1287 = vmul.f32 %v1284, 1.442695
    %v1288 = vpow.pop %v1287
    %v1289 = vsel %vm145, %v1286, 0.0
    %1290 = vadd.xlane.f32.xlu0 %v1289
    %v1291 = vpop.xlane.xlu0 %1290
    %v1292 = vsel %vm145, %v1288, 0.0
    %1293 = vadd.xlane.f32.xlu0 %v1292
    %v1294 = vpop.xlane.xlu0 %1293
    %v1295 = vrcp.pop %v1291
    %v1296 = vrcp.pop %v1294
    %v1297 = vmul.f32 %v1286, %v1295
    %v1298 = vmul.f32 %v1288, %v1296
    %1299 = vrot.lane.b32.xlu0 %v900, 80
    %v1300 = vpop.permute.xlu0 %1299
    %v1303 = vsel %vm145, %v1297, 0
    %1305 = vmatpush.msra.mxu0 0.0
    %1306 = vmatpush.msra.mxu0 0.0
    %1307 = vmatpush.msra.mxu0 0.0
    %1308 = vmatpush.msra.mxu0 0.0
    %1309 = vmatpush.msra.mxu0 0.0
    %1310 = vmatpush.msra.mxu0 0.0
    %1311 = vmatpush.msra.mxu0 0.0
    %1312 = vmatpush.msra.mxu0 0.0
    %1313 = vmatpush.msra.mxu0 0.0
    %1314 = vmatpush.msra.mxu0 0.0
    %1315 = vmatpush.msra.mxu0 0.0
    %1316 = vmatpush.msra.mxu0 0.0
    %1317 = vmatpush.msra.mxu0 0.0
    %1318 = vmatpush.msra.mxu0 0.0
    %1319 = vmatpush.msra.mxu0 0.0
    %1320 = vmatpush.msra.mxu0 %v1300
    %1321 = vmatmul.f32.gmra.mxu0 %v1303
    %v1322 = vpop.f32.mrf.mxu0
    %v1323 = vadd.f32 0.0, %v1322
    %1324 = vdwg.mxu0
    %1325 = vrot.lane.b32.xlu0 %v903, 80
    %v1326 = vpop.permute.xlu0 %1325
    %v1329 = vsel %vm145, %v1298, 0
    %1331 = vmatpush.msra.mxu0 0.0
    %1332 = vmatpush.msra.mxu0 0.0
    %1333 = vmatpush.msra.mxu0 0.0
    %1334 = vmatpush.msra.mxu0 0.0
    %1335 = vmatpush.msra.mxu0 0.0
    %1336 = vmatpush.msra.mxu0 0.0
    %1337 = vmatpush.msra.mxu0 0.0
    %1338 = vmatpush.msra.mxu0 0.0
    %1339 = vmatpush.msra.mxu0 0.0
    %1340 = vmatpush.msra.mxu0 0.0
    %1341 = vmatpush.msra.mxu0 0.0
    %1342 = vmatpush.msra.mxu0 0.0
    %1343 = vmatpush.msra.mxu0 0.0
    %1344 = vmatpush.msra.mxu0 0.0
    %1345 = vmatpush.msra.mxu0 0.0
    %1346 = vmatpush.msra.mxu0 %v1326
    %1347 = vmatmul.f32.gmra.mxu0 %v1329
    %v1348 = vpop.f32.mrf.mxu0
    %v1349 = vadd.f32 0.0, %v1348
    %1350 = vdwg.mxu0
    %v1351 = vld [vmem:[%s8 + $0x10] sm:$0xff]
    %v1353 = vsel %vm145, %v1323, 0
    %v1356 = vsel %vm145, %v1349, 0
    %1358 = vmatpush.msra.mxu0 0.0
    %1359 = vmatpush.msra.mxu0 0.0
    %1360 = vmatpush.msra.mxu0 0.0
    %1361 = vmatpush.msra.mxu0 0.0
    %1362 = vmatpush.msra.mxu0 0.0
    %1363 = vmatpush.msra.mxu0 0.0
    %1364 = vmatpush.msra.mxu0 0.0
    %1365 = vmatpush.msra.mxu0 0.0
    %1366 = vmatpush.msra.mxu0 0.0
    %1367 = vmatpush.msra.mxu0 0.0
    %1368 = vmatpush.msra.mxu0 0.0
    %1369 = vmatpush.msra.mxu0 0.0
    %1370 = vmatpush.msra.mxu0 0.0
    %1371 = vmatpush.msra.mxu0 0.0
    %1372 = vmatpush.msra.mxu0 0.0
    %1373 = vmatpush.msra.mxu0 %v1351
    %1374 = vmatmul.f32.gmra.mxu0 %v1353
    %v1375 = vpop.f32.mrf.mxu0
    %v1376 = vadd.f32 0.0, %v1375
    %1377 = vmatmul.f32.gmra.mxu0 %v1356
    %v1378 = vpop.f32.mrf.mxu0
    %v1379 = vadd.f32 0.0, %v1378
    %1380 = vdwg.mxu0
    %v1381 = vadd.f32 %v1216, %v1376
    %v1382 = vadd.f32 %v1219, %v1379
    %1383 = vrot.lane.b32.xlu0 %v865, 104
    %v1384 = vpop.permute.xlu0 %1383
    %1385 = vrot.lane.b32.xlu0 %v900, 104
    %v1386 = vpop.permute.xlu0 %1385
    %v1387 = vsel %vm145, %v1384, 0
    %v1389 = vsel %vm145, %v1386, 0
    %1391 = vmatpush.xpose.msra.mxu0 0.0
    %1392 = vmatpush.xpose.msra.mxu0 0.0
    %1393 = vmatpush.xpose.msra.mxu0 0.0
    %1394 = vmatpush.xpose.msra.mxu0 0.0
    %1395 = vmatpush.xpose.msra.mxu0 0.0
    %1396 = vmatpush.xpose.msra.mxu0 0.0
    %1397 = vmatpush.xpose.msra.mxu0 0.0
    %1398 = vmatpush.xpose.msra.mxu0 0.0
    %1399 = vmatpush.xpose.msra.mxu0 0.0
    %1400 = vmatpush.xpose.msra.mxu0 0.0
    %1401 = vmatpush.xpose.msra.mxu0 0.0
    %1402 = vmatpush.xpose.msra.mxu0 0.0
    %1403 = vmatpush.xpose.msra.mxu0 0.0
    %1404 = vmatpush.xpose.msra.mxu0 0.0
    %1405 = vmatpush.xpose.msra.mxu0 0.0
    %1406 = vmatpush.xpose.msra.mxu0 %v1389
    %1407 = vmatmul.f32.gmra.mxu0 %v1387
    %v1408 = vpop.f32.mrf.mxu0
    %v1409 = vadd.f32 %v53, %v1408
    %1410 = vdwg.mxu0
    %1411 = vrot.lane.b32.xlu0 %v868, 104
    %v1412 = vpop.permute.xlu0 %1411
    %1413 = vrot.lane.b32.xlu0 %v903, 104
    %v1414 = vpop.permute.xlu0 %1413
    %v1415 = vsel %vm145, %v1412, 0
    %v1417 = vsel %vm145, %v1414, 0
    %1419 = vmatpush.xpose.msra.mxu0 0.0
    %1420 = vmatpush.xpose.msra.mxu0 0.0
    %1421 = vmatpush.xpose.msra.mxu0 0.0
    %1422 = vmatpush.xpose.msra.mxu0 0.0
    %1423 = vmatpush.xpose.msra.mxu0 0.0
    %1424 = vmatpush.xpose.msra.mxu0 0.0
    %1425 = vmatpush.xpose.msra.mxu0 0.0
    %1426 = vmatpush.xpose.msra.mxu0 0.0
    %1427 = vmatpush.xpose.msra.mxu0 0.0
    %1428 = vmatpush.xpose.msra.mxu0 0.0
    %1429 = vmatpush.xpose.msra.mxu0 0.0
    %1430 = vmatpush.xpose.msra.mxu0 0.0
    %1431 = vmatpush.xpose.msra.mxu0 0.0
    %1432 = vmatpush.xpose.msra.mxu0 0.0
    %1433 = vmatpush.xpose.msra.mxu0 0.0
    %1434 = vmatpush.xpose.msra.mxu0 %v1417
    %1435 = vmatmul.f32.gmra.mxu0 %v1415
    %v1436 = vpop.f32.mrf.mxu0
    %v1437 = vadd.f32 %v54, %v1436
    %1438 = vdwg.mxu0
    %v1439 = vsel %vm145, %v1409, -inf
    %1440 = vmax.xlane.f32.xlu0 %v1439
    %v1441 = vpop.xlane.xlu0 %1440
    %v1442 = vsel %vm145, %v1437, -inf
    %1443 = vmax.xlane.f32.xlu0 %v1442
    %v1444 = vpop.xlane.xlu0 %1443
    %v1445 = vsub.f32 %v1409, %v1441
    %v1446 = vsub.f32 %v1437, %v1444
    %v1447 = vmul.f32 %v1445, 1.442695
    %v1448 = vpow.pop %v1447
    %v1449 = vmul.f32 %v1446, 1.442695
    %v1450 = vpow.pop %v1449
    %v1451 = vsel %vm145, %v1448, 0.0
    %1452 = vadd.xlane.f32.xlu0 %v1451
    %v1453 = vpop.xlane.xlu0 %1452
    %v1454 = vsel %vm145, %v1450, 0.0
    %1455 = vadd.xlane.f32.xlu0 %v1454
    %v1456 = vpop.xlane.xlu0 %1455
    %v1457 = vrcp.pop %v1453
    %v1458 = vrcp.pop %v1456
    %v1459 = vmul.f32 %v1448, %v1457
    %v1460 = vmul.f32 %v1450, %v1458
    %1461 = vrot.lane.b32.xlu0 %v900, 72
    %v1462 = vpop.permute.xlu0 %1461
    %v1465 = vsel %vm145, %v1459, 0
    %1467 = vmatpush.msra.mxu0 0.0
    %1468 = vmatpush.msra.mxu0 0.0
    %1469 = vmatpush.msra.mxu0 0.0
    %1470 = vmatpush.msra.mxu0 0.0
    %1471 = vmatpush.msra.mxu0 0.0
    %1472 = vmatpush.msra.mxu0 0.0
    %1473 = vmatpush.msra.mxu0 0.0
    %1474 = vmatpush.msra.mxu0 0.0
    %1475 = vmatpush.msra.mxu0 0.0
    %1476 = vmatpush.msra.mxu0 0.0
    %1477 = vmatpush.msra.mxu0 0.0
    %1478 = vmatpush.msra.mxu0 0.0
    %1479 = vmatpush.msra.mxu0 0.0
    %1480 = vmatpush.msra.mxu0 0.0
    %1481 = vmatpush.msra.mxu0 0.0
    %1482 = vmatpush.msra.mxu0 %v1462
    %1483 = vmatmul.f32.gmra.mxu0 %v1465
    %v1484 = vpop.f32.mrf.mxu0
    %v1485 = vadd.f32 0.0, %v1484
    %1486 = vdwg.mxu0
    %1487 = vrot.lane.b32.xlu0 %v903, 72
    %v1488 = vpop.permute.xlu0 %1487
    %v1491 = vsel %vm145, %v1460, 0
    %1493 = vmatpush.msra.mxu0 0.0
    %1494 = vmatpush.msra.mxu0 0.0
    %1495 = vmatpush.msra.mxu0 0.0
    %1496 = vmatpush.msra.mxu0 0.0
    %1497 = vmatpush.msra.mxu0 0.0
    %1498 = vmatpush.msra.mxu0 0.0
    %1499 = vmatpush.msra.mxu0 0.0
    %1500 = vmatpush.msra.mxu0 0.0
    %1501 = vmatpush.msra.mxu0 0.0
    %1502 = vmatpush.msra.mxu0 0.0
    %1503 = vmatpush.msra.mxu0 0.0
    %1504 = vmatpush.msra.mxu0 0.0
    %1505 = vmatpush.msra.mxu0 0.0
    %1506 = vmatpush.msra.mxu0 0.0
    %1507 = vmatpush.msra.mxu0 0.0
    %1508 = vmatpush.msra.mxu0 %v1488
    %1509 = vmatmul.f32.gmra.mxu0 %v1491
    %v1510 = vpop.f32.mrf.mxu0
    %v1511 = vadd.f32 0.0, %v1510
    %1512 = vdwg.mxu0
    %v1513 = vld [vmem:[%s8 + $0x18] sm:$0xff]
    %v1515 = vsel %vm145, %v1485, 0
    %v1518 = vsel %vm145, %v1511, 0
    %1520 = vmatpush.msra.mxu0 0.0
    %1521 = vmatpush.msra.mxu0 0.0
    %1522 = vmatpush.msra.mxu0 0.0
    %1523 = vmatpush.msra.mxu0 0.0
    %1524 = vmatpush.msra.mxu0 0.0
    %1525 = vmatpush.msra.mxu0 0.0
    %1526 = vmatpush.msra.mxu0 0.0
    %1527 = vmatpush.msra.mxu0 0.0
    %1528 = vmatpush.msra.mxu0 0.0
    %1529 = vmatpush.msra.mxu0 0.0
    %1530 = vmatpush.msra.mxu0 0.0
    %1531 = vmatpush.msra.mxu0 0.0
    %1532 = vmatpush.msra.mxu0 0.0
    %1533 = vmatpush.msra.mxu0 0.0
    %1534 = vmatpush.msra.mxu0 0.0
    %1535 = vmatpush.msra.mxu0 %v1513
    %1536 = vmatmul.f32.gmra.mxu0 %v1515
    %v1537 = vpop.f32.mrf.mxu0
    %v1538 = vadd.f32 0.0, %v1537
    %1539 = vmatmul.f32.gmra.mxu0 %v1518
    %v1540 = vpop.f32.mrf.mxu0
    %v1541 = vadd.f32 0.0, %v1540
    %1542 = vdwg.mxu0
    %v1543 = vadd.f32 %v1381, %v1538
    %v1544 = vadd.f32 %v1382, %v1541
    %v1545 = vld [vmem:[%s8 + $0x20] sm:$0x1]
    %v1546 = vperm.slane %v1545, 0
    %v1547 = vadd.f32 %v1543, %v1546
    %v1548 = vadd.f32 %v1544, %v1546
    %v1549 = vadd.f32 %v1547, %v789
    %v1550 = vadd.f32 %v1548, %v790
    %v1551 = vsel %vm55, %v1549, 0.0
    %1552 = vadd.xlane.f32.xlu0 %v1551
    %v1553 = vpop.xlane.xlu0 %1552
    %v1554 = vsel %vm55, %v1550, 0.0
    %1555 = vadd.xlane.f32.xlu0 %v1554
    %v1556 = vpop.xlane.xlu0 %1555
    %v1557 = vmul.f32 %v1553, %v68
    %v1558 = vmul.f32 %v1556, %v68
    %v1559 = vsub.f32 %v1549, %v1557
    %v1560 = vsub.f32 %v1550, %v1558
    %v1561 = vmul.f32 %v1559, %v1559
    %v1562 = vmul.f32 %v1560, %v1560
    %v1563 = vsel %vm55, %v1561, 0.0
    %1564 = vadd.xlane.f32.xlu0 %v1563
    %v1565 = vpop.xlane.xlu0 %1564
    %v1566 = vsel %vm55, %v1562, 0.0
    %1567 = vadd.xlane.f32.xlu0 %v1566
    %v1568 = vpop.xlane.xlu0 %1567
    %v1569 = vmul.f32 %v1565, %v68
    %v1570 = vmul.f32 %v1568, %v68
    %v1571 = vadd.f32 %v1569, 1e-05
    %v1572 = vadd.f32 %v1570, 1e-05
    %v1573 = vrsqrt.pop %v1571
    %v1574 = vmul.f32 %v1573, %v1571
    %v1575 = vmul.f32 %v1574, %v1573
    %v1576 = vmul.f32 0.5, %v1575
    %v1577 = vsub.f32 1.5, %v1576
    %v1578 = vmul.f32 %v1573, %v1577
    %vm1579 = vweird.f32 %v1571
    %vm1580 = vweird.f32 %v1573
    %vm1581 = vmor %vm1579, %vm1580
    %v1582 = vsel %vm1581, %v1573, %v1578
    %v1583 = vrsqrt.pop %v1572
    %v1584 = vmul.f32 %v1583, %v1572
    %v1585 = vmul.f32 %v1584, %v1583
    %v1586 = vmul.f32 0.5, %v1585
    %v1587 = vsub.f32 1.5, %v1586
    %v1588 = vmul.f32 %v1583, %v1587
    %vm1589 = vweird.f32 %v1572
    %vm1590 = vweird.f32 %v1583
    %vm1591 = vmor %vm1589, %vm1590
    %v1592 = vsel %vm1591, %v1583, %v1588
    %v1593 = vmul.f32 %v1559, %v1582
    %v1594 = vmul.f32 %v1560, %v1592
    %v1595 = vld [vmem:[%s9] sm:$0xff]
    %v1596 = vld [vmem:[%s9 + $0x8] sm:$0xff]
    %v1597 = vld [vmem:[%s9 + $0x10] sm:$0xff]
    %v1598 = vld [vmem:[%s9 + $0x18] sm:$0xff]
    %v1599 = vld [vmem:[%s9 + $0x20] sm:$0x1]
    %v1600 = vperm.slane %v1599, 0
    %v1602 = vsel %vm55, %v1593, 0
    %v1605 = vsel %vm55, %v1594, 0
    %1607 = vmatpush.msra.mxu0 0.0
    %1608 = vmatpush.msra.mxu0 0.0
    %1609 = vmatpush.msra.mxu0 0.0
    %1610 = vmatpush.msra.mxu0 0.0
    %1611 = vmatpush.msra.mxu0 0.0
    %1612 = vmatpush.msra.mxu0 0.0
    %1613 = vmatpush.msra.mxu0 0.0
    %1614 = vmatpush.msra.mxu0 0.0
    %1615 = vmatpush.msra.mxu0 0.0
    %1616 = vmatpush.msra.mxu0 0.0
    %1617 = vmatpush.msra.mxu0 0.0
    %1618 = vmatpush.msra.mxu0 0.0
    %1619 = vmatpush.msra.mxu0 %v1598
    %1620 = vmatpush.msra.mxu0 %v1597
    %1621 = vmatpush.msra.mxu0 %v1596
    %1622 = vmatpush.msra.mxu0 %v1595
    %1623 = vmatmul.f32.gmra.mxu0 %v1602
    %v1624 = vpop.f32.mrf.mxu0
    %v1625 = vadd.f32 %v1600, %v1624
    %1626 = vmatmul.f32.gmra.mxu0 %v1605
    %v1627 = vpop.f32.mrf.mxu0
    %v1628 = vadd.f32 %v1600, %v1627
    %1629 = vdwg.mxu0
    %v1630 = vmax.f32 %v1625, 0.0
    %v1631 = vmax.f32 %v1628, 0.0
    %v1632 = vld [vmem:[%s10] sm:$0xff]
    %v1633 = vld [vmem:[%s10 + $0x8] sm:$0xff]
    %v1634 = vld [vmem:[%s10 + $0x10] sm:$0xff]
    %v1635 = vld [vmem:[%s10 + $0x18] sm:$0xff]
    %v1636 = vld [vmem:[%s10 + $0x20] sm:$0xff]
    %v1637 = vld [vmem:[%s10 + $0x28] sm:$0xff]
    %v1638 = vld [vmem:[%s10 + $0x30] sm:$0xff]
    %v1639 = vld [vmem:[%s10 + $0x38] sm:$0xff]
    %v1640 = vld [vmem:[%s10 + $0x40] sm:$0xff]
    %v1641 = vld [vmem:[%s10 + $0x48] sm:$0xff]
    %v1642 = vld [vmem:[%s10 + $0x50] sm:$0xff]
    %v1643 = vld [vmem:[%s10 + $0x58] sm:$0xff]
    %v1644 = vld [vmem:[%s10 + $0x60] sm:$0xff]
    %v1645 = vld [vmem:[%s10 + $0x68] sm:$0xff]
    %v1646 = vld [vmem:[%s10 + $0x70] sm:$0xff]
    %v1647 = vld [vmem:[%s10 + $0x78] sm:$0xff]
    %v1648 = vld [vmem:[%s10 + $0x80] sm:$0x1]
    %v1649 = vperm.slane %v1648, 0
    %1650 = vmatpush.msra.mxu0 %v1647
    %1651 = vmatpush.msra.mxu0 %v1646
    %1652 = vmatpush.msra.mxu0 %v1645
    %1653 = vmatpush.msra.mxu0 %v1644
    %1654 = vmatpush.msra.mxu0 %v1643
    %1655 = vmatpush.msra.mxu0 %v1642
    %1656 = vmatpush.msra.mxu0 %v1641
    %1657 = vmatpush.msra.mxu0 %v1640
    %1658 = vmatpush.msra.mxu0 %v1639
    %1659 = vmatpush.msra.mxu0 %v1638
    %1660 = vmatpush.msra.mxu0 %v1637
    %1661 = vmatpush.msra.mxu0 %v1636
    %1662 = vmatpush.msra.mxu0 %v1635
    %1663 = vmatpush.msra.mxu0 %v1634
    %1664 = vmatpush.msra.mxu0 %v1633
    %1665 = vmatpush.msra.mxu0 %v1632
    %1666 = vmatmul.f32.gmra.mxu0 %v1630
    %v1667 = vpop.f32.mrf.mxu0
    %v1668 = vadd.f32 %v1649, %v1667
    %1669 = vmatmul.f32.gmra.mxu0 %v1631
    %v1670 = vpop.f32.mrf.mxu0
    %v1671 = vadd.f32 %v1649, %v1670
    %1672 = vdwg.mxu0
    %v1673 = vadd.f32 %v1668, %v1549
    %v1674 = vadd.f32 %v1671, %v1550
    %1675 = vst.msk [vmem:[#allocation2] sm:$0xff] %vm55, %v1673
    %1676 = vst.msk [vmem:[#allocation2 + $0x8] sm:$0xff] %vm55, %v1674
    // Predicated region
    $region46: #{tpu_custom_call.1} parent=1 // pred_check
      _
    $region47: #{tpu_custom_call.1} parent=1 // pred_check_branch
      %1678 = sbr.rel (0) target = $region49
    $region48: #{tpu_custom_call.1} parent=1 // pred_region
      %1680 = vsyncadd [#allocation3], 0
      %s1681 = sshll.u32 [#allocation2], 4
      %s1682 = int_to_ptr.vmem [resolvable:$true] %s1681
      %s1683 = sshll.u32 %s11, 4
      %s1684 = int_to_ptr.hbm [resolvable:$true] %s1683
      %1689 = dma.vmem_to_hbm [thread:$0]  %s1682, 256, %s1684, [#allocation3], 128, 128, 8
    $region49: #{tpu_custom_call.1} parent=1 // pred_fallthru
      _
    // Predicated region
    $region50: #{tpu_custom_call.1} parent=1 // pred_check
      _
    $region51: #{tpu_custom_call.1} parent=1 // pred_check_branch
      %1691 = sbr.rel (0) target = $region53
    $region52: #{tpu_custom_call.1} parent=1 // pred_region
      %1693 = dma.done [#allocation3], 256
    $region53: #{tpu_custom_call.1} parent=1 // pred_fallthru
      _
    %1694 = vsyncpa [#allocation3], 1

</llo_original>
